<compile_context>
chip_gen: v5e
topology: v5e:2x2
jax: 0.10.0
libtpu: 0.0.40
codegen_flags: <defaults>
</compile_context>

<pallas_src>
import jax
import jax.numpy as jnp
from jax.experimental import pallas as pl
from jax.experimental.pallas import tpu as pltpu

IB = 8            # RoIs (images) handled per block of the fused conv-head kernel
LANE = 128
SUBLANE = 8
VMEM_LIMIT = 48 * 1024 * 1024


def _round_up(x, m):
    return (x + m - 1) // m * m


def _pick_tile(dim, prefs):
    for p in prefs:
        if dim >= p and dim % p == 0:
            return p
    return dim


# ---------------------------------------------------------------------------
# FC head: tiled matmul + bias + ReLU  (3-D grid, f32 accumulator)
# ---------------------------------------------------------------------------

def _matmul_bias_relu_kernel(x_ref, w_ref, b_ref, o_ref, acc_ref):
    k = pl.program_id(2)

    @pl.when(k == 0)
    def _():
        acc_ref[...] = jnp.zeros_like(acc_ref)

    acc_ref[...] += jnp.dot(x_ref[...], w_ref[...],
                            preferred_element_type=jnp.float32)

    @pl.when(k == pl.num_programs(2) - 1)
    def _():
        o_ref[...] = jnp.maximum(acc_ref[...] + b_ref[...], 0.0).astype(o_ref.dtype)


def matmul_bias_relu(x, w, b, *, out_dtype=jnp.float32):
    """relu(x @ w + b).  x:(M,K) bf16, w:(K,N) bf16, b:(1,N) f32.

    Caller guarantees M % 8 == 0 and K, N % 128 == 0 (zero-padded)."""
    M, K = x.shape
    K2, N = w.shape
    assert K == K2 and b.shape == (1, N)
    assert M % SUBLANE == 0 and K % LANE == 0 and N % LANE == 0
    tm = _pick_tile(M, (256, 128, 64, 32, 16, 8))
    tn = _pick_tile(N, (256, 128))
    tk = _pick_tile(K, (512, 256, 128))
    grid = (M // tm, N // tn, K // tk)
    return pl.pallas_call(
        _matmul_bias_relu_kernel,
        out_shape=jax.ShapeDtypeStruct((M, N), out_dtype),
        grid_spec=pltpu.PrefetchScalarGridSpec(
            num_scalar_prefetch=0,
            grid=grid,
            in_specs=[
                pl.BlockSpec((tm, tk), lambda i, j, k: (i, k)),
                pl.BlockSpec((tk, tn), lambda i, j, k: (k, j)),
                pl.BlockSpec((1, tn), lambda i, j, k: (0, j)),
            ],
            out_specs=pl.BlockSpec((tm, tn), lambda i, j, k: (i, j)),
            scratch_shapes=[pltpu.VMEM((tm, tn), jnp.float32)],
        ),
        compiler_params=pltpu.CompilerParams(
            dimension_semantics=("parallel", "parallel", "arbitrary"),
            vmem_limit_bytes=VMEM_LIMIT),
    )(x, w, b)


# ---------------------------------------------------------------------------
# Conv head: fused BasicBlock (+ folded BN) + adaptive average pool
# ---------------------------------------------------------------------------

def _basic_block_pool_kernel(patches_ref, xflat_ref, pool_ref,
                             w1_ref, b1_ref, w2_ref, b2_ref, w3_ref, b3_ref,
                             o_ref):
    # conv1 (3x3 via im2col patches) + folded bn1 + relu  -- stays in VMEM.
    h1 = jnp.dot(patches_ref[...], w1_ref[...],
                 preferred_element_type=jnp.float32)
    h1 = jnp.maximum(h1 + b1_ref[...], 0.0).astype(jnp.bfloat16)

    # conv2 (1x1) + folded bn2 + relu.
    h2 = jnp.dot(h1, w2_ref[...], preferred_element_type=jnp.float32)
    h2 = jnp.maximum(h2 + b2_ref[...], 0.0)

    # identity branch: conv3 (1x1) + folded bn3 + relu.
    ident = jnp.dot(xflat_ref[...], w3_ref[...],
                    preferred_element_type=jnp.float32)
    ident = jnp.maximum(ident + b3_ref[...], 0.0)

    out = jnp.maximum(h2 + ident, 0.0)

    # fused adaptive_avg_pool2d((1,1)): per-RoI mean expressed as a small MXU
    # matmul against a constant (IB, IB*H*W) pooling matrix -> lane-dense out.
    o_ref[...] = jnp.dot(pool_ref[...], out, preferred_element_type=jnp.float32)


def basic_block_pool(patches, xflat, pool_mat, w1, b1, w2, b2, w3, b3):
    M, K1 = patches.shape
    Cp = xflat.shape[1]
    Coutp = w2.shape[1]
    BR = pool_mat.shape[1]            # rows (spatial positions) per block
    assert M % BR == 0
    n_tiles = M // BR
    n_img_pad = n_tiles * IB
    return pl.pallas_call(
        _basic_block_pool_kernel,
        out_shape=jax.ShapeDtypeStruct((n_img_pad, Coutp), jnp.float32),
        grid_spec=pltpu.PrefetchScalarGridSpec(
            num_scalar_prefetch=0,
            grid=(n_tiles,),
            in_specs=[
                pl.BlockSpec((BR, K1), lambda i: (i, 0)),
                pl.BlockSpec((BR, Cp), lambda i: (i, 0)),
                pl.BlockSpec((IB, BR), lambda i: (0, 0)),
                pl.BlockSpec((K1, Cp), lambda i: (0, 0)),
                pl.BlockSpec((1, Cp), lambda i: (0, 0)),
                pl.BlockSpec((Cp, Coutp), lambda i: (0, 0)),
                pl.BlockSpec((1, Coutp), lambda i: (0, 0)),
                pl.BlockSpec((Cp, Coutp), lambda i: (0, 0)),
                pl.BlockSpec((1, Coutp), lambda i: (0, 0)),
            ],
            out_specs=pl.BlockSpec((IB, Coutp), lambda i: (i, 0)),
        ),
        compiler_params=pltpu.CompilerParams(
            dimension_semantics=("parallel",),
            vmem_limit_bytes=VMEM_LIMIT),
    )(patches, xflat, pool_mat, w1, b1, w2, b2, w3, b3)


# ---------------------------------------------------------------------------
# Parameter preparation: BN folding, transposes, lane padding, bf16 cast
# ---------------------------------------------------------------------------

def bn_fold(gamma, beta, mean, var, eps=1e-5):
    scale = gamma / jnp.sqrt(var + eps)
    shift = beta - mean * scale
    return scale, shift


def prepare_params(raw, H, W):
    """One-time prep: fold BN into conv weights, transpose/pad/cast for TPU."""
    conv1_w = raw["conv1_w"]          # (C, C, 3, 3)
    conv2_w = raw["conv2_w"]          # (Cout, C, 1, 1)
    conv3_w = raw["conv3_w"]          # (Cout, C, 1, 1)
    C = conv1_w.shape[0]
    Cout = conv2_w.shape[0]
    Cp = _round_up(C, LANE)
    Coutp = _round_up(Cout, LANE)
    Kp1 = _round_up(C * 9, LANE)

    s1, sh1 = bn_fold(*raw["bn1"])
    s2, sh2 = bn_fold(*raw["bn2"])
    s3, sh3 = bn_fold(*raw["bn3"])

    # conv1: matmul weight (Cin*9, Cout), K index = cin*9 + kh*3 + kw.
    w1 = (conv1_w * s1[:, None, None, None]).reshape(C, C * 9).T
    w1 = jnp.pad(w1, ((0, Kp1 - C * 9), (0, Cp - C))).astype(jnp.bfloat16)
    b1 = jnp.pad(sh1, (0, Cp - C)).reshape(1, Cp).astype(jnp.float32)

    w2 = (conv2_w.reshape(Cout, C) * s2[:, None]).T
    w2 = jnp.pad(w2, ((0, Cp - C), (0, Coutp - Cout))).astype(jnp.bfloat16)
    b2 = jnp.pad(sh2, (0, Coutp - Cout)).reshape(1, Coutp).astype(jnp.float32)

    w3 = (conv3_w.reshape(Cout, C) * s3[:, None]).T
    w3 = jnp.pad(w3, ((0, Cp - C), (0, Coutp - Cout))).astype(jnp.bfloat16)
    b3 = jnp.pad(sh3, (0, Coutp - Cout)).reshape(1, Coutp).astype(jnp.float32)

    # constant per-RoI average-pool matrix used inside the fused kernel.
    hw = H * W
    r = jnp.arange(IB * hw) // hw
    pool = (r[None, :] == jnp.arange(IB)[:, None]).astype(jnp.float32) / hw

    # FC head: pre-transpose + pad once (weights bf16, biases f32).
    fcs = []
    k_in = _round_up(raw["fcs"][0][0].shape[1], LANE)
    for w, b in raw["fcs"]:
        n_out, n_in = w.shape
        n_out_p = _round_up(n_out, LANE)
        wt = jnp.pad(w.T, ((0, k_in - n_in), (0, n_out_p - n_out))).astype(jnp.bfloat16)
        bp = jnp.pad(b, (0, n_out_p - n_out)).reshape(1, n_out_p).astype(jnp.float32)
        fcs.append((wt, bp))
        k_in = n_out_p

    return {
        "C": C, "Cout": Cout, "Cp": Cp, "Coutp": Coutp, "Kp1": Kp1,
        "fc_dim": raw["fcs"][-1][0].shape[0],
        "w1": w1, "b1": b1, "w2": w2, "b2": b2, "w3": w3, "b3": b3,
        "pool": pool, "fcs": fcs,
    }


# ---------------------------------------------------------------------------
# Forward
# ---------------------------------------------------------------------------

def double_head_forward(x, p):
    """x: (N, C, H, W) f32 -> (loc_feat (N, conv_dim), cls_feat (N, fc_dim))."""
    N, C, H, W = x.shape
    HW = H * W
    Cp, Kp1 = p["Cp"], p["Kp1"]

    # -------- conv head (bbox path): fused BasicBlock + avgpool ------------
    n_img_pad = _round_up(N, IB)
    x_nhwc = jnp.transpose(x, (0, 2, 3, 1))                       # NHWC
    x_nhwc = jnp.pad(x_nhwc, ((0, n_img_pad - N), (0, 0), (0, 0), (0, 0)))

    # TODO(synk): im2col is still materialized wrapper-side (bf16); moving the
    # 3x3 halo reads inside the kernel would remove the remaining 9x read blow-up.
    xp = jnp.pad(x_nhwc, ((0, 0), (1, 1), (1, 1), (0, 0)))
    cols = [xp[:, kh:kh + H, kw:kw + W, :] for kh in range(3) for kw in range(3)]
    patches = jnp.stack(cols, axis=-1).reshape(n_img_pad * HW, C * 9)
    patches = jnp.pad(patches, ((0, 0), (0, Kp1 - C * 9))).astype(jnp.bfloat16)

    xflat = jnp.pad(x_nhwc.reshape(n_img_pad * HW, C),
                    ((0, 0), (0, Cp - C))).astype(jnp.bfloat16)

    loc = basic_block_pool(patches, xflat, p["pool"],
                           p["w1"], p["b1"], p["w2"], p["b2"], p["w3"], p["b3"])
    loc_feat = loc[:N, :p["Cout"]]

    # -------- fc head (classification path) --------------------------------
    in_dim = C * HW                                   # torch.flatten(x, 1) on NCHW
    k_pad = p["fcs"][0][0].shape[0]
    m_pad = _round_up(N, 256) if N > 256 else _round_up(N, SUBLANE)
    cls = jnp.pad(x.reshape(N, in_dim), ((0, m_pad - N), (0, k_pad - in_dim)))
    cls = cls.astype(jnp.bfloat16)
    n_fc = len(p["fcs"])
    for li, (w, b) in enumerate(p["fcs"]):
        out_dtype = jnp.float32 if li == n_fc - 1 else jnp.bfloat16
        cls = matmul_bias_relu(cls, w, b, out_dtype=out_dtype)
    cls_feat = cls[:N, :p["fc_dim"]]

    # TODO(synk): convs[1:4] are `Bottleneck(conv_dim, conv_dim // 4)` in the
    # reference, but the Bottleneck class is not defined in the provided
    # source; they are skipped.
    return loc_feat, cls_feat


# ---------------------------------------------------------------------------
# Raw (torch-like) parameter init + pure-JAX reference for sanity checking
# ---------------------------------------------------------------------------

def init_params(key, in_channels, conv_dim, fc_dim, H, W):
    ks = jax.random.split(key, 10)
    C, Cout = in_channels, conv_dim

    def bn_params(k, ch):
        k1, k2, k3, k4 = jax.random.split(k, 4)
        gamma = 1.0 + 0.1 * jax.random.normal(k1, (ch,), jnp.float32)
        beta = 0.1 * jax.random.normal(k2, (ch,), jnp.float32)
        mean = 0.1 * jax.random.normal(k3, (ch,), jnp.float32)
        var = 1.0 + 0.2 * jax.random.uniform(k4, (ch,), jnp.float32)
        return (gamma, beta, mean, var)

    raw = {
        "conv1_w": 0.1 * jax.random.normal(ks[0], (C, C, 3, 3), jnp.float32),
        "bn1": bn_params(ks[1], C),
        "conv2_w": 0.1 * jax.random.normal(ks[2], (Cout, C, 1, 1), jnp.float32),
        "bn2": bn_params(ks[3], Cout),
        "conv3_w": 0.1 * jax.random.normal(ks[4], (Cout, C, 1, 1), jnp.float32),
        "bn3": bn_params(ks[5], Cout),
    }
    fcs = []
    d_in = C * H * W
    for i in range(2):                 # num_fc = 2
        kw, kb = jax.random.split(ks[6 + i], 2)
        bound = 1.0 / jnp.sqrt(d_in)
        w = jax.random.uniform(kw, (fc_dim, d_in), jnp.float32, -bound, bound)
        b = jax.random.uniform(kb, (fc_dim,), jnp.float32, -bound, bound)
        fcs.append((w, b))
        d_in = fc_dim
    raw["fcs"] = fcs
    return raw


def _ref_forward(x, raw):
    N, C, H, W = x.shape
    Cout = raw["conv2_w"].shape[0]
    s1, b1 = bn_fold(*raw["bn1"])
    s2, b2 = bn_fold(*raw["bn2"])
    s3, b3 = bn_fold(*raw["bn3"])

    x_nhwc = x.transpose(0, 2, 3, 1)
    xf = x_nhwc.reshape(N * H * W, C)
    ident = jnp.maximum(xf @ raw["conv3_w"].reshape(Cout, C).T * s3 + b3, 0.0)

    xp = jnp.pad(x_nhwc, ((0, 0), (1, 1), (1, 1), (0, 0)))
    cols = [xp[:, kh:kh + H, kw:kw + W, :] for kh in range(3) for kw in range(3)]
    patches = jnp.stack(cols, axis=-1).reshape(N * H * W, C * 9)
    out = jnp.maximum(patches @ raw["conv1_w"].reshape(C, C * 9).T * s1 + b1, 0.0)
    out = jnp.maximum(out @ raw["conv2_w"].reshape(Cout, C).T * s2 + b2, 0.0)
    out = jnp.maximum(out + ident, 0.0)
    loc_feat = out.reshape(N, H * W, Cout).mean(axis=1)

    cls_feat = x.reshape(N, C * H * W)
    for w, b in raw["fcs"]:
        cls_feat = jnp.maximum(cls_feat @ w.T + b, 0.0)
    return loc_feat, cls_feat


# ---------------------------------------------------------------------------
# Main
# ---------------------------------------------------------------------------

if __name__ == "__main__":
    key = jax.random.PRNGKey(0)
    k_x, k_p = jax.random.split(key)

    # RoI features are 7x7 spatially (module sets _output_size = C * 7 * 7).
    N, C, H, W = 2, 4, 7, 7
    conv_dim, fc_dim = 16, 32

    x = jax.random.normal(k_x, (N, C, H, W), jnp.float32)
    raw = init_params(k_p, C, conv_dim, fc_dim, H, W)
    params = prepare_params(raw, H, W)

    loc_feat, cls_feat = double_head_forward(x, params)
    jax.block_until_ready((loc_feat, cls_feat))

    assert loc_feat.shape == (N, conv_dim)
    assert cls_feat.shape == (N, fc_dim)

    ref_loc, ref_cls = _ref_forward(x, raw)
    assert jnp.allclose(loc_feat, ref_loc, rtol=2e-2, atol=2e-2), \
        float(jnp.max(jnp.abs(loc_feat - ref_loc)))
    assert jnp.allclose(cls_feat, ref_cls, rtol=2e-2, atol=2e-2), \
        float(jnp.max(jnp.abs(cls_feat - ref_cls)))

    print("KERNEL_OK")
</pallas_src>

<mosaic_0001>
module attributes {stable_mosaic.version = 11 : i64} {
  func.func @_basic_block_pool_kernel(%arg0: i32, %arg1: memref<392x128xbf16, #tpu.memory_space<vmem>>, %arg2: memref<392x128xbf16, #tpu.memory_space<vmem>>, %arg3: memref<8x392xf32, #tpu.memory_space<vmem>>, %arg4: memref<128x128xbf16, #tpu.memory_space<vmem>>, %arg5: memref<1x128xf32, #tpu.memory_space<vmem>>, %arg6: memref<128x128xbf16, #tpu.memory_space<vmem>>, %arg7: memref<1x128xf32, #tpu.memory_space<vmem>>, %arg8: memref<128x128xbf16, #tpu.memory_space<vmem>>, %arg9: memref<1x128xf32, #tpu.memory_space<vmem>>, %arg10: memref<8x128xf32, #tpu.memory_space<vmem>>) attributes {dimension_semantics = [#tpu.dimension_semantics<parallel>], iteration_bounds = array<i64: 1>, scalar_prefetch = 0 : i64, scratch_operands = 0 : i64, tpu.core_type = #tpu.core_type<tc>, window_params = [{transform_indices = @transform_0, window_bounds = array<i64: 392, 128>}, {transform_indices = @transform_1, window_bounds = array<i64: 392, 128>}, {pipeline_mode = #tpu.pipeline_mode<synchronous>, transform_indices = @transform_2, window_bounds = array<i64: 8, 392>}, {pipeline_mode = #tpu.pipeline_mode<synchronous>, transform_indices = @transform_3, window_bounds = array<i64: 128, 128>}, {pipeline_mode = #tpu.pipeline_mode<synchronous>, transform_indices = @transform_4, window_bounds = array<i64: 1, 128>}, {pipeline_mode = #tpu.pipeline_mode<synchronous>, transform_indices = @transform_5, window_bounds = array<i64: 128, 128>}, {pipeline_mode = #tpu.pipeline_mode<synchronous>, transform_indices = @transform_6, window_bounds = array<i64: 1, 128>}, {pipeline_mode = #tpu.pipeline_mode<synchronous>, transform_indices = @transform_7, window_bounds = array<i64: 128, 128>}, {pipeline_mode = #tpu.pipeline_mode<synchronous>, transform_indices = @transform_8, window_bounds = array<i64: 1, 128>}, {transform_indices = @transform_9, window_bounds = array<i64: 8, 128>}]} {
    %c0 = arith.constant 0 : index
    %c0_0 = arith.constant 0 : index
    %0 = vector.load %arg1[%c0, %c0_0] : memref<392x128xbf16, #tpu.memory_space<vmem>>, vector<392x128xbf16>
    %c0_1 = arith.constant 0 : index
    %c0_2 = arith.constant 0 : index
    %1 = vector.load %arg4[%c0_1, %c0_2] : memref<128x128xbf16, #tpu.memory_space<vmem>>, vector<128x128xbf16>
    %cst = arith.constant dense<0.000000e+00> : vector<392x128xf32>
    %2 = tpu.matmul %0, %1, %cst {dimension_numbers = #tpu.dot_dimension_numbers<[1], [0], [0], [1], [0, 0, 1, 1], [], []>} : vector<392x128xbf16>, vector<128x128xbf16>, vector<392x128xf32> -> vector<392x128xf32>
    %c0_3 = arith.constant 0 : index
    %c0_4 = arith.constant 0 : index
    %3 = vector.load %arg5[%c0_3, %c0_4] : memref<1x128xf32, #tpu.memory_space<vmem>>, vector<1x128xf32>
    %4 = vector.broadcast %3 : vector<1x128xf32> to vector<392x128xf32>
    %5 = arith.addf %2, %4 : vector<392x128xf32>
    %cst_5 = arith.constant 0.000000e+00 : f32
    %6 = vector.broadcast %cst_5 : f32 to vector<392x128xf32>
    %7 = arith.maximumf %5, %6 : vector<392x128xf32>
    %8 = arith.truncf %7 : vector<392x128xf32> to vector<392x128xbf16>
    %c0_6 = arith.constant 0 : index
    %c0_7 = arith.constant 0 : index
    %9 = vector.load %arg6[%c0_6, %c0_7] : memref<128x128xbf16, #tpu.memory_space<vmem>>, vector<128x128xbf16>
    %cst_8 = arith.constant dense<0.000000e+00> : vector<392x128xf32>
    %10 = tpu.matmul %8, %9, %cst_8 {dimension_numbers = #tpu.dot_dimension_numbers<[1], [0], [0], [1], [0, 0, 1, 1], [], []>} : vector<392x128xbf16>, vector<128x128xbf16>, vector<392x128xf32> -> vector<392x128xf32>
    %c0_9 = arith.constant 0 : index
    %c0_10 = arith.constant 0 : index
    %11 = vector.load %arg7[%c0_9, %c0_10] : memref<1x128xf32, #tpu.memory_space<vmem>>, vector<1x128xf32>
    %12 = vector.broadcast %11 : vector<1x128xf32> to vector<392x128xf32>
    %13 = arith.addf %10, %12 : vector<392x128xf32>
    %cst_11 = arith.constant 0.000000e+00 : f32
    %14 = vector.broadcast %cst_11 : f32 to vector<392x128xf32>
    %15 = arith.maximumf %13, %14 : vector<392x128xf32>
    %c0_12 = arith.constant 0 : index
    %c0_13 = arith.constant 0 : index
    %16 = vector.load %arg2[%c0_12, %c0_13] : memref<392x128xbf16, #tpu.memory_space<vmem>>, vector<392x128xbf16>
    %c0_14 = arith.constant 0 : index
    %c0_15 = arith.constant 0 : index
    %17 = vector.load %arg8[%c0_14, %c0_15] : memref<128x128xbf16, #tpu.memory_space<vmem>>, vector<128x128xbf16>
    %cst_16 = arith.constant dense<0.000000e+00> : vector<392x128xf32>
    %18 = tpu.matmul %16, %17, %cst_16 {dimension_numbers = #tpu.dot_dimension_numbers<[1], [0], [0], [1], [0, 0, 1, 1], [], []>} : vector<392x128xbf16>, vector<128x128xbf16>, vector<392x128xf32> -> vector<392x128xf32>
    %c0_17 = arith.constant 0 : index
    %c0_18 = arith.constant 0 : index
    %19 = vector.load %arg9[%c0_17, %c0_18] : memref<1x128xf32, #tpu.memory_space<vmem>>, vector<1x128xf32>
    %20 = vector.broadcast %19 : vector<1x128xf32> to vector<392x128xf32>
    %21 = arith.addf %18, %20 : vector<392x128xf32>
    %cst_19 = arith.constant 0.000000e+00 : f32
    %22 = vector.broadcast %cst_19 : f32 to vector<392x128xf32>
    %23 = arith.maximumf %21, %22 : vector<392x128xf32>
    %24 = arith.addf %15, %23 : vector<392x128xf32>
    %cst_20 = arith.constant 0.000000e+00 : f32
    %25 = vector.broadcast %cst_20 : f32 to vector<392x128xf32>
    %26 = arith.maximumf %24, %25 : vector<392x128xf32>
    %c0_21 = arith.constant 0 : index
    %c0_22 = arith.constant 0 : index
    %27 = vector.load %arg3[%c0_21, %c0_22] : memref<8x392xf32, #tpu.memory_space<vmem>>, vector<8x392xf32>
    %cst_23 = arith.constant dense<0.000000e+00> : vector<8x128xf32>
    %28 = tpu.matmul %27, %26, %cst_23 {dimension_numbers = #tpu.dot_dimension_numbers<[1], [0], [0], [1], [0, 0, 1, 1], [], []>} : vector<8x392xf32>, vector<392x128xf32>, vector<8x128xf32> -> vector<8x128xf32>
    %c0_24 = arith.constant 0 : index
    %c0_25 = arith.constant 0 : index
    %29 = vector.load %arg10[%c0_24, %c0_25] : memref<8x128xf32, #tpu.memory_space<vmem>>, vector<8x128xf32>
    tpu.vector_store %arg10[%c0_24, %c0_25], %28 {strides = array<i32>} : memref<8x128xf32, #tpu.memory_space<vmem>>, vector<8x128xf32>,
    return
  }
  func.func @transform_0(%arg0: i32) -> (i32, i32) {
    %c0_i32 = arith.constant 0 : i32
    %c0_i32_0 = arith.constant 0 : i32
    return %arg0, %c0_i32 : i32, i32
  }
  func.func @transform_1(%arg0: i32) -> (i32, i32) {
    %c0_i32 = arith.constant 0 : i32
    %c0_i32_0 = arith.constant 0 : i32
    return %arg0, %c0_i32 : i32, i32
  }
  func.func @transform_2(%arg0: i32) -> (i32, i32) {
    %c0_i32 = arith.constant 0 : i32
    %c0_i32_0 = arith.constant 0 : i32
    %c0_i32_1 = arith.constant 0 : i32
    return %c0_i32, %c0_i32_0 : i32, i32
  }
  func.func @transform_3(%arg0: i32) -> (i32, i32) {
    %c0_i32 = arith.constant 0 : i32
    %c0_i32_0 = arith.constant 0 : i32
    %c0_i32_1 = arith.constant 0 : i32
    return %c0_i32, %c0_i32_0 : i32, i32
  }
  func.func @transform_4(%arg0: i32) -> (i32, i32) {
    %c0_i32 = arith.constant 0 : i32
    %c0_i32_0 = arith.constant 0 : i32
    %c0_i32_1 = arith.constant 0 : i32
    return %c0_i32, %c0_i32_0 : i32, i32
  }
  func.func @transform_5(%arg0: i32) -> (i32, i32) {
    %c0_i32 = arith.constant 0 : i32
    %c0_i32_0 = arith.constant 0 : i32
    %c0_i32_1 = arith.constant 0 : i32
    return %c0_i32, %c0_i32_0 : i32, i32
  }
  func.func @transform_6(%arg0: i32) -> (i32, i32) {
    %c0_i32 = arith.constant 0 : i32
    %c0_i32_0 = arith.constant 0 : i32
    %c0_i32_1 = arith.constant 0 : i32
    return %c0_i32, %c0_i32_0 : i32, i32
  }
  func.func @transform_7(%arg0: i32) -> (i32, i32) {
    %c0_i32 = arith.constant 0 : i32
    %c0_i32_0 = arith.constant 0 : i32
    %c0_i32_1 = arith.constant 0 : i32
    return %c0_i32, %c0_i32_0 : i32, i32
  }
  func.func @transform_8(%arg0: i32) -> (i32, i32) {
    %c0_i32 = arith.constant 0 : i32
    %c0_i32_0 = arith.constant 0 : i32
    %c0_i32_1 = arith.constant 0 : i32
    return %c0_i32, %c0_i32_0 : i32, i32
  }
  func.func @transform_9(%arg0: i32) -> (i32, i32) {
    %c0_i32 = arith.constant 0 : i32
    %c0_i32_0 = arith.constant 0 : i32
    return %arg0, %c0_i32 : i32, i32
  }
}

</mosaic_0001>

<llo_original>
// kernel: tpu_custom_call.1
$region0: #{tpu_custom_call.1}
  #allocation0 [shape = 'u32[]', space=smem, size = 0x4, offset = 0x4, fixed_abs, tag = 'smem constant byte address 0x4 - core index']
  #allocation1 [shape = 'u32[72,128]{1,0:T(1,128)}', space=vmem, size = 0x9000, scoped, tag = 'internal scratch']
  %s0 = inlined_call_operand.hbm [shape: bf16[392,128], index: 0, kind: input, shape index: {}]
  %s1 = inlined_call_operand.hbm [shape: bf16[392,128], index: 1, kind: input, shape index: {}]
  %s2 = inlined_call_operand.hbm [shape: f32[8,392], index: 2, kind: input, shape index: {}]
  %s3 = inlined_call_operand.hbm [shape: bf16[128,128], index: 3, kind: input, shape index: {}]
  %s4 = inlined_call_operand.vmem [shape: f32[1,128], index: 4, kind: input, shape index: {}]
  %s5 = inlined_call_operand.hbm [shape: bf16[128,128], index: 5, kind: input, shape index: {}]
  %s6 = inlined_call_operand.vmem [shape: f32[1,128], index: 6, kind: input, shape index: {}]
  %s7 = inlined_call_operand.hbm [shape: bf16[128,128], index: 7, kind: input, shape index: {}]
  %s8 = inlined_call_operand.vmem [shape: f32[1,128], index: 8, kind: input, shape index: {}]
  %s9 = inlined_call_operand.hbm [shape: f32[8,128], index: 9, kind: output, shape index: {}]
  %s10 = sld [smem:[#allocation0]]
  $region70: #{tpu_custom_call.1} parent=0
    _
  %s12 = ssub.s32 1, %s10
  %s13 = scalar_select 0, %s12, %s10
  $region1: #{tpu_custom_call.1} parent=0
    #allocation2 [shape = 'u8[100352]{0}', space=vmem, size = 0x18800, scoped, tag = 'input window, operand 0, single buffered']
    #allocation3 [shape = 's32[1]{0}', space=sflag, size = 0x4, scoped, tag = 'scoped memory for tpu_custom_call.1']
    #allocation4 [shape = 's32[1]{0}', space=sflag, size = 0x4, scoped, tag = 'scoped memory for tpu_custom_call.1']
    #allocation5 [shape = 'u8[100352]{0}', space=vmem, size = 0x18800, scoped, tag = 'input window, operand 1, single buffered']
    #allocation6 [shape = 's32[1]{0}', space=sflag, size = 0x4, scoped, tag = 'scoped memory for tpu_custom_call.1']
    #allocation7 [shape = 'u8[16384]{0}', space=vmem, size = 0x4000, scoped, tag = 'input window, operand 2, single buffered']
    #allocation8 [shape = 'u8[32768]{0}', space=vmem, size = 0x8000, scoped, tag = 'input window, operand 3, single buffered']
    #allocation9 [shape = 's32[1]{0}', space=sflag, size = 0x4, scoped, tag = 'scoped memory for tpu_custom_call.1']
    #allocation10 [shape = 'u8[32768]{0}', space=vmem, size = 0x8000, scoped, tag = 'input window, operand 5, single buffered']
    #allocation11 [shape = 'u8[32768]{0}', space=vmem, size = 0x8000, scoped, tag = 'input window, operand 7, single buffered']
    #allocation12 [shape = 's32[1]{0}', space=sflag, size = 0x4, scoped, tag = 'scoped memory for tpu_custom_call.1']
    #allocation13 [shape = 'u8[4096]{0}', space=vmem, size = 0x1000, scoped, tag = 'output window, operand 0, single buffered']
    %14 = vsyncpa [#allocation3], 0
    %15 = vsyncpa [#allocation6], 0
    %16 = vsyncpa [#allocation9], 0
    %17 = vsyncpa [#allocation12], 0
    %18 = vsyncpa [#allocation4], 0
    // Predicated region
    $region2: #{tpu_custom_call.1} parent=1 // pred_check
      _
    $region3: #{tpu_custom_call.1} parent=1 // pred_check_branch
      %20 = sbr.rel (0) target = $region5
    $region4: #{tpu_custom_call.1} parent=1 // pred_region
      %22 = vsyncadd [#allocation3], 0
      %s23 = sshll.u32 %s0, 4
      %s24 = int_to_ptr.hbm [resolvable:$true] %s23
      %s25 = sshll.u32 [#allocation2], 4
      %s26 = int_to_ptr.vmem [resolvable:$true] %s25
      %31 = dma.hbm_to_vmem [thread:$0]  %s24, 3136, %s26, [#allocation3], 64, 64, 4
    $region5: #{tpu_custom_call.1} parent=1 // pred_fallthru
      _
    // Predicated region
    $region6: #{tpu_custom_call.1} parent=1 // pred_check
      _
    $region7: #{tpu_custom_call.1} parent=1 // pred_check_branch
      %33 = sbr.rel (0) target = $region9
    $region8: #{tpu_custom_call.1} parent=1 // pred_region
      %35 = vsyncadd [#allocation6], 0
      %s36 = sshll.u32 %s1, 4
      %s37 = int_to_ptr.hbm [resolvable:$true] %s36
      %s38 = sshll.u32 [#allocation5], 4
      %s39 = int_to_ptr.vmem [resolvable:$true] %s38
      %44 = dma.hbm_to_vmem [thread:$0]  %s37, 3136, %s39, [#allocation6], 64, 64, 4
    $region9: #{tpu_custom_call.1} parent=1 // pred_fallthru
      _
    // Predicated region
    $region10: #{tpu_custom_call.1} parent=1 // pred_check
      _
    $region11: #{tpu_custom_call.1} parent=1 // pred_check_branch
      %46 = sbr.rel (0) target = $region13
    $region12: #{tpu_custom_call.1} parent=1 // pred_region
      %48 = vsyncadd [#allocation6], 0
      %s50 = sshll.u32 %s2, 4
      %s51 = int_to_ptr.hbm [resolvable:$true] %s50
      %s52 = sshll.u32 [#allocation7], 4
      %s53 = int_to_ptr.vmem [resolvable:$true] %s52
      %55 = dma.hbm_to_vmem [thread:$0]  %s51, 512, %s53, [#allocation6]
    $region13: #{tpu_custom_call.1} parent=1 // pred_fallthru
      _
    // Predicated region
    $region14: #{tpu_custom_call.1} parent=1 // pred_check
      _
    $region15: #{tpu_custom_call.1} parent=1 // pred_check_branch
      %57 = sbr.rel (0) target = $region17
    $region16: #{tpu_custom_call.1} parent=1 // pred_region
      %59 = vsyncadd [#allocation9], 0
      %s60 = sshll.u32 %s3, 4
      %s61 = int_to_ptr.hbm [resolvable:$true] %s60
      %s62 = sshll.u32 [#allocation8], 4
      %s63 = int_to_ptr.vmem [resolvable:$true] %s62
      %68 = dma.hbm_to_vmem [thread:$0]  %s61, 1024, %s63, [#allocation9], 64, 64, 4
    $region17: #{tpu_custom_call.1} parent=1 // pred_fallthru
      _
    // Predicated region
    $region18: #{tpu_custom_call.1} parent=1 // pred_check
      _
    $region19: #{tpu_custom_call.1} parent=1 // pred_check_branch
      %70 = sbr.rel (0) target = $region21
    $region20: #{tpu_custom_call.1} parent=1 // pred_region
      _
    $region21: #{tpu_custom_call.1} parent=1 // pred_fallthru
      _
    // Predicated region
    $region22: #{tpu_custom_call.1} parent=1 // pred_check
      _
    $region23: #{tpu_custom_call.1} parent=1 // pred_check_branch
      %72 = sbr.rel (0) target = $region25
    $region24: #{tpu_custom_call.1} parent=1 // pred_region
      %74 = vsyncadd [#allocation9], 0
      %s75 = sshll.u32 %s5, 4
      %s76 = int_to_ptr.hbm [resolvable:$true] %s75
      %s77 = sshll.u32 [#allocation10], 4
      %s78 = int_to_ptr.vmem [resolvable:$true] %s77
      %83 = dma.hbm_to_vmem [thread:$0]  %s76, 1024, %s78, [#allocation9], 64, 64, 4
    $region25: #{tpu_custom_call.1} parent=1 // pred_fallthru
      _
    // Predicated region
    $region26: #{tpu_custom_call.1} parent=1 // pred_check
      _
    $region27: #{tpu_custom_call.1} parent=1 // pred_check_branch
      %85 = sbr.rel (0) target = $region29
    $region28: #{tpu_custom_call.1} parent=1 // pred_region
      _
    $region29: #{tpu_custom_call.1} parent=1 // pred_fallthru
      _
    // Predicated region
    $region30: #{tpu_custom_call.1} parent=1 // pred_check
      _
    $region31: #{tpu_custom_call.1} parent=1 // pred_check_branch
      %87 = sbr.rel (0) target = $region33
    $region32: #{tpu_custom_call.1} parent=1 // pred_region
      %89 = vsyncadd [#allocation12], 0
      %s90 = sshll.u32 %s7, 4
      %s91 = int_to_ptr.hbm [resolvable:$true] %s90
      %s92 = sshll.u32 [#allocation11], 4
      %s93 = int_to_ptr.vmem [resolvable:$true] %s92
      %98 = dma.hbm_to_vmem [thread:$0]  %s91, 1024, %s93, [#allocation12], 64, 64, 4
    $region33: #{tpu_custom_call.1} parent=1 // pred_fallthru
      _
    // Predicated region
    $region34: #{tpu_custom_call.1} parent=1 // pred_check
      _
    $region35: #{tpu_custom_call.1} parent=1 // pred_check_branch
      %100 = sbr.rel (0) target = $region37
    $region36: #{tpu_custom_call.1} parent=1 // pred_region
      _
    $region37: #{tpu_custom_call.1} parent=1 // pred_fallthru
      _
    // Predicated region
    $region38: #{tpu_custom_call.1} parent=1 // pred_check
      _
    $region39: #{tpu_custom_call.1} parent=1 // pred_check_branch
      %102 = sbr.rel (0) target = $region41
    $region40: #{tpu_custom_call.1} parent=1 // pred_region
      %104 = dma.done [#allocation3], 3136
    $region41: #{tpu_custom_call.1} parent=1 // pred_fallthru
      _
    // Predicated region
    $region42: #{tpu_custom_call.1} parent=1 // pred_check
      _
    $region43: #{tpu_custom_call.1} parent=1 // pred_check_branch
      %106 = sbr.rel (0) target = $region45
    $region44: #{tpu_custom_call.1} parent=1 // pred_region
      %108 = dma.done [#allocation6], 3136
    $region45: #{tpu_custom_call.1} parent=1 // pred_fallthru
      _
    // Predicated region
    $region46: #{tpu_custom_call.1} parent=1 // pred_check
      _
    $region47: #{tpu_custom_call.1} parent=1 // pred_check_branch
      %110 = sbr.rel (0) target = $region49
    $region48: #{tpu_custom_call.1} parent=1 // pred_region
      %112 = dma.done [#allocation6], 512
    $region49: #{tpu_custom_call.1} parent=1 // pred_fallthru
      _
    // Predicated region
    $region50: #{tpu_custom_call.1} parent=1 // pred_check
      _
    $region51: #{tpu_custom_call.1} parent=1 // pred_check_branch
      %114 = sbr.rel (0) target = $region53
    $region52: #{tpu_custom_call.1} parent=1 // pred_region
      %116 = dma.done [#allocation9], 1024
    $region53: #{tpu_custom_call.1} parent=1 // pred_fallthru
      _
    // Predicated region
    $region54: #{tpu_custom_call.1} parent=1 // pred_check
      _
    $region55: #{tpu_custom_call.1} parent=1 // pred_check_branch
      %118 = sbr.rel (0) target = $region57
    $region56: #{tpu_custom_call.1} parent=1 // pred_region
      %120 = dma.done [#allocation9], 1024
    $region57: #{tpu_custom_call.1} parent=1 // pred_fallthru
      _
    // Predicated region
    $region58: #{tpu_custom_call.1} parent=1 // pred_check
      _
    $region59: #{tpu_custom_call.1} parent=1 // pred_check_branch
      %122 = sbr.rel (0) target = $region61
    $region60: #{tpu_custom_call.1} parent=1 // pred_region
      %124 = dma.done [#allocation12], 1024
    $region61: #{tpu_custom_call.1} parent=1 // pred_fallthru
      _
    %v125 = vld [vmem:[#allocation2] sm:$0xf]
    %v126 = vld [vmem:[#allocation2 + $0x4] sm:$0xf]
    %v127 = vld [vmem:[#allocation2 + $0x8] sm:$0xf]
    %v128 = vld [vmem:[#allocation2 + $0xc] sm:$0xf]
    %v129 = vld [vmem:[#allocation2 + $0x10] sm:$0xf]
    %v130 = vld [vmem:[#allocation2 + $0x14] sm:$0xf]
    %v131 = vld [vmem:[#allocation2 + $0x18] sm:$0xf]
    %v132 = vld [vmem:[#allocation2 + $0x1c] sm:$0xf]
    %v133 = vld [vmem:[#allocation2 + $0x20] sm:$0xf]
    %v134 = vld [vmem:[#allocation2 + $0x24] sm:$0xf]
    %v135 = vld [vmem:[#allocation2 + $0x28] sm:$0xf]
    %v136 = vld [vmem:[#allocation2 + $0x2c] sm:$0xf]
    %v137 = vld [vmem:[#allocation2 + $0x30] sm:$0xf]
    %v138 = vld [vmem:[#allocation2 + $0x34] sm:$0xf]
    %v139 = vld [vmem:[#allocation2 + $0x38] sm:$0xf]
    %v140 = vld [vmem:[#allocation2 + $0x3c] sm:$0xf]
    %v141 = vld [vmem:[#allocation2 + $0x40] sm:$0xf]
    %v142 = vld [vmem:[#allocation2 + $0x44] sm:$0xf]
    %v143 = vld [vmem:[#allocation2 + $0x48] sm:$0xf]
    %v144 = vld [vmem:[#allocation2 + $0x4c] sm:$0xf]
    %v145 = vld [vmem:[#allocation2 + $0x50] sm:$0xf]
    %v146 = vld [vmem:[#allocation2 + $0x54] sm:$0xf]
    %v147 = vld [vmem:[#allocation2 + $0x58] sm:$0xf]
    %v148 = vld [vmem:[#allocation2 + $0x5c] sm:$0xf]
    %v149 = vld [vmem:[#allocation2 + $0x60] sm:$0xf]
    %v150 = vld [vmem:[#allocation2 + $0x64] sm:$0xf]
    %v151 = vld [vmem:[#allocation2 + $0x68] sm:$0xf]
    %v152 = vld [vmem:[#allocation2 + $0x6c] sm:$0xf]
    %v153 = vld [vmem:[#allocation2 + $0x70] sm:$0xf]
    %v154 = vld [vmem:[#allocation2 + $0x74] sm:$0xf]
    %v155 = vld [vmem:[#allocation2 + $0x78] sm:$0xf]
    %v156 = vld [vmem:[#allocation2 + $0x7c] sm:$0xf]
    %v157 = vld [vmem:[#allocation2 + $0x80] sm:$0xf]
    %v158 = vld [vmem:[#allocation2 + $0x84] sm:$0xf]
    %v159 = vld [vmem:[#allocation2 + $0x88] sm:$0xf]
    %v160 = vld [vmem:[#allocation2 + $0x8c] sm:$0xf]
    %v161 = vld [vmem:[#allocation2 + $0x90] sm:$0xf]
    %v162 = vld [vmem:[#allocation2 + $0x94] sm:$0xf]
    %v163 = vld [vmem:[#allocation2 + $0x98] sm:$0xf]
    %v164 = vld [vmem:[#allocation2 + $0x9c] sm:$0xf]
    %v165 = vld [vmem:[#allocation2 + $0xa0] sm:$0xf]
    %v166 = vld [vmem:[#allocation2 + $0xa4] sm:$0xf]
    %v167 = vld [vmem:[#allocation2 + $0xa8] sm:$0xf]
    %v168 = vld [vmem:[#allocation2 + $0xac] sm:$0xf]
    %v169 = vld [vmem:[#allocation2 + $0xb0] sm:$0xf]
    %v170 = vld [vmem:[#allocation2 + $0xb4] sm:$0xf]
    %v171 = vld [vmem:[#allocation2 + $0xb8] sm:$0xf]
    %v172 = vld [vmem:[#allocation2 + $0xbc] sm:$0xf]
    %v173 = vld [vmem:[#allocation2 + $0xc0] sm:$0xf]
    %v174 = vld [vmem:[#allocation8] sm:$0xf]
    %v175 = vld [vmem:[#allocation8 + $0x4] sm:$0xf]
    %v176 = vld [vmem:[#allocation8 + $0x8] sm:$0xf]
    %v177 = vld [vmem:[#allocation8 + $0xc] sm:$0xf]
    %v178 = vld [vmem:[#allocation8 + $0x10] sm:$0xf]
    %v179 = vld [vmem:[#allocation8 + $0x14] sm:$0xf]
    %v180 = vld [vmem:[#allocation8 + $0x18] sm:$0xf]
    %v181 = vld [vmem:[#allocation8 + $0x1c] sm:$0xf]
    %v182 = vld [vmem:[#allocation8 + $0x20] sm:$0xf]
    %v183 = vld [vmem:[#allocation8 + $0x24] sm:$0xf]
    %v184 = vld [vmem:[#allocation8 + $0x28] sm:$0xf]
    %v185 = vld [vmem:[#allocation8 + $0x2c] sm:$0xf]
    %v186 = vld [vmem:[#allocation8 + $0x30] sm:$0xf]
    %v187 = vld [vmem:[#allocation8 + $0x34] sm:$0xf]
    %v188 = vld [vmem:[#allocation8 + $0x38] sm:$0xf]
    %v189 = vld [vmem:[#allocation8 + $0x3c] sm:$0xf]
    %v190 = vld [vmem:[%s4] sm:$0x1]
    %v192 = vperm.slane %v190, 0
    %v243 = vunpack.c.l.b16 %v125
    %v244 = vunpack.c.l.b16 %v126
    %v245 = vunpack.c.l.b16 %v127
    %v246 = vunpack.c.l.b16 %v128
    %v247 = vunpack.c.l.b16 %v129
    %v248 = vunpack.c.l.b16 %v130
    %v249 = vunpack.c.l.b16 %v131
    %v250 = vunpack.c.l.b16 %v132
    %v251 = vunpack.c.l.b16 %v133
    %v252 = vunpack.c.l.b16 %v134
    %v253 = vunpack.c.l.b16 %v135
    %v254 = vunpack.c.l.b16 %v136
    %v255 = vunpack.c.l.b16 %v137
    %v256 = vunpack.c.l.b16 %v138
    %v257 = vunpack.c.l.b16 %v139
    %v258 = vunpack.c.l.b16 %v140
    %v259 = vunpack.c.l.b16 %v141
    %v260 = vunpack.c.l.b16 %v142
    %v261 = vunpack.c.l.b16 %v143
    %v262 = vunpack.c.l.b16 %v144
    %v263 = vunpack.c.l.b16 %v145
    %v264 = vunpack.c.l.b16 %v146
    %v265 = vunpack.c.l.b16 %v147
    %v266 = vunpack.c.l.b16 %v148
    %v267 = vunpack.c.l.b16 %v149
    %v268 = vunpack.c.l.b16 %v150
    %v269 = vunpack.c.l.b16 %v151
    %v270 = vunpack.c.l.b16 %v152
    %v271 = vunpack.c.l.b16 %v153
    %v272 = vunpack.c.l.b16 %v154
    %v273 = vunpack.c.l.b16 %v155
    %v274 = vunpack.c.l.b16 %v156
    %v275 = vunpack.c.l.b16 %v157
    %v276 = vunpack.c.l.b16 %v158
    %v277 = vunpack.c.l.b16 %v159
    %v278 = vunpack.c.l.b16 %v160
    %v279 = vunpack.c.l.b16 %v161
    %v280 = vunpack.c.l.b16 %v162
    %v281 = vunpack.c.l.b16 %v163
    %v282 = vunpack.c.l.b16 %v164
    %v283 = vunpack.c.l.b16 %v165
    %v284 = vunpack.c.l.b16 %v166
    %v285 = vunpack.c.l.b16 %v167
    %v286 = vunpack.c.l.b16 %v168
    %v287 = vunpack.c.l.b16 %v169
    %v288 = vunpack.c.l.b16 %v170
    %v289 = vunpack.c.l.b16 %v171
    %v290 = vunpack.c.l.b16 %v172
    %v291 = vunpack.c.l.b16 %v173
    %v292 = vpack.c.b16 %v244, %v243
    %v293 = vpack.c.b16 %v246, %v245
    %v294 = vpack.c.b16 %v248, %v247
    %v295 = vpack.c.b16 %v250, %v249
    %v296 = vpack.c.b16 %v252, %v251
    %v297 = vpack.c.b16 %v254, %v253
    %v298 = vpack.c.b16 %v256, %v255
    %v299 = vpack.c.b16 %v258, %v257
    %v300 = vpack.c.b16 %v260, %v259
    %v301 = vpack.c.b16 %v262, %v261
    %v302 = vpack.c.b16 %v264, %v263
    %v303 = vpack.c.b16 %v266, %v265
    %v304 = vpack.c.b16 %v268, %v267
    %v305 = vpack.c.b16 %v270, %v269
    %v306 = vpack.c.b16 %v272, %v271
    %v307 = vpack.c.b16 %v274, %v273
    %v308 = vpack.c.b16 %v276, %v275
    %v309 = vpack.c.b16 %v278, %v277
    %v310 = vpack.c.b16 %v280, %v279
    %v311 = vpack.c.b16 %v282, %v281
    %v312 = vpack.c.b16 %v284, %v283
    %v313 = vpack.c.b16 %v286, %v285
    %v314 = vpack.c.b16 %v288, %v287
    %v315 = vpack.c.b16 %v290, %v289
    %v316 = vpack.c.b16 %v291, %v291
    %v358 = vunpack.c.l.b16 %v174
    %v359 = vunpack.c.l.b16 %v175
    %v360 = vunpack.c.l.b16 %v176
    %v361 = vunpack.c.l.b16 %v177
    %v362 = vunpack.c.l.b16 %v178
    %v363 = vunpack.c.l.b16 %v179
    %v364 = vunpack.c.l.b16 %v180
    %v365 = vunpack.c.l.b16 %v181
    %v366 = vunpack.c.l.b16 %v182
    %v367 = vunpack.c.l.b16 %v183
    %v368 = vunpack.c.l.b16 %v184
    %v369 = vunpack.c.l.b16 %v185
    %v370 = vunpack.c.l.b16 %v186
    %v371 = vunpack.c.l.b16 %v187
    %v372 = vunpack.c.l.b16 %v188
    %v373 = vunpack.c.l.b16 %v189
    %v374 = vpack.c.b16 %v359, %v358
    %v375 = vpack.c.b16 %v361, %v360
    %v376 = vpack.c.b16 %v363, %v362
    %v377 = vpack.c.b16 %v365, %v364
    %v378 = vpack.c.b16 %v367, %v366
    %v379 = vpack.c.b16 %v369, %v368
    %v380 = vpack.c.b16 %v371, %v370
    %v381 = vpack.c.b16 %v373, %v372
    %390 = vmatpush.bf16.msra.mxu0 %v381
    %391 = vmatpush.bf16.msra.mxu0 %v380
    %392 = vmatpush.bf16.msra.mxu0 %v379
    %393 = vmatpush.bf16.msra.mxu0 %v378
    %394 = vmatpush.bf16.msra.mxu0 %v377
    %395 = vmatpush.bf16.msra.mxu0 %v376
    %396 = vmatpush.bf16.msra.mxu0 %v375
    %397 = vmatpush.bf16.msra.mxu0 %v374
    %398 = vmatmul.bf16.gmra.mxu0 %v292
    %v399 = vpop.f32.mrf.mxu0
    %v400 = vadd.f32 %v192, %v399
    %v401 = vpop.f32.mrf.mxu0
    %v402 = vadd.f32 %v192, %v401
    %403 = vmatmul.bf16.gmra.mxu0 %v293
    %v404 = vpop.f32.mrf.mxu0
    %v405 = vadd.f32 %v192, %v404
    %v406 = vpop.f32.mrf.mxu0
    %v407 = vadd.f32 %v192, %v406
    %408 = vmatmul.bf16.gmra.mxu0 %v294
    %v409 = vpop.f32.mrf.mxu0
    %v410 = vadd.f32 %v192, %v409
    %v411 = vpop.f32.mrf.mxu0
    %v412 = vadd.f32 %v192, %v411
    %413 = vmatmul.bf16.gmra.mxu0 %v295
    %v414 = vpop.f32.mrf.mxu0
    %v415 = vadd.f32 %v192, %v414
    %v416 = vpop.f32.mrf.mxu0
    %v417 = vadd.f32 %v192, %v416
    %418 = vmatmul.bf16.gmra.mxu0 %v296
    %v419 = vpop.f32.mrf.mxu0
    %v420 = vadd.f32 %v192, %v419
    %v421 = vpop.f32.mrf.mxu0
    %v422 = vadd.f32 %v192, %v421
    %423 = vmatmul.bf16.gmra.mxu0 %v297
    %v424 = vpop.f32.mrf.mxu0
    %v425 = vadd.f32 %v192, %v424
    %v426 = vpop.f32.mrf.mxu0
    %v427 = vadd.f32 %v192, %v426
    %428 = vmatmul.bf16.gmra.mxu0 %v298
    %v429 = vpop.f32.mrf.mxu0
    %v430 = vadd.f32 %v192, %v429
    %v431 = vpop.f32.mrf.mxu0
    %v432 = vadd.f32 %v192, %v431
    %433 = vmatmul.bf16.gmra.mxu0 %v299
    %v434 = vpop.f32.mrf.mxu0
    %v435 = vadd.f32 %v192, %v434
    %v436 = vpop.f32.mrf.mxu0
    %v437 = vadd.f32 %v192, %v436
    %438 = vmatmul.bf16.gmra.mxu0 %v300
    %v439 = vpop.f32.mrf.mxu0
    %v440 = vadd.f32 %v192, %v439
    %v441 = vpop.f32.mrf.mxu0
    %v442 = vadd.f32 %v192, %v441
    %443 = vmatmul.bf16.gmra.mxu0 %v301
    %v444 = vpop.f32.mrf.mxu0
    %v445 = vadd.f32 %v192, %v444
    %v446 = vpop.f32.mrf.mxu0
    %v447 = vadd.f32 %v192, %v446
    %448 = vmatmul.bf16.gmra.mxu0 %v302
    %v449 = vpop.f32.mrf.mxu0
    %v450 = vadd.f32 %v192, %v449
    %v451 = vpop.f32.mrf.mxu0
    %v452 = vadd.f32 %v192, %v451
    %453 = vmatmul.bf16.gmra.mxu0 %v303
    %v454 = vpop.f32.mrf.mxu0
    %v455 = vadd.f32 %v192, %v454
    %v456 = vpop.f32.mrf.mxu0
    %v457 = vadd.f32 %v192, %v456
    %458 = vmatmul.bf16.gmra.mxu0 %v304
    %v459 = vpop.f32.mrf.mxu0
    %v460 = vadd.f32 %v192, %v459
    %v461 = vpop.f32.mrf.mxu0
    %v462 = vadd.f32 %v192, %v461
    %463 = vmatmul.bf16.gmra.mxu0 %v305
    %v464 = vpop.f32.mrf.mxu0
    %v465 = vadd.f32 %v192, %v464
    %v466 = vpop.f32.mrf.mxu0
    %v467 = vadd.f32 %v192, %v466
    %468 = vmatmul.bf16.gmra.mxu0 %v306
    %v469 = vpop.f32.mrf.mxu0
    %v470 = vadd.f32 %v192, %v469
    %v471 = vpop.f32.mrf.mxu0
    %v472 = vadd.f32 %v192, %v471
    %473 = vmatmul.bf16.gmra.mxu0 %v307
    %v474 = vpop.f32.mrf.mxu0
    %v475 = vadd.f32 %v192, %v474
    %v476 = vpop.f32.mrf.mxu0
    %v477 = vadd.f32 %v192, %v476
    %478 = vmatmul.bf16.gmra.mxu0 %v308
    %v479 = vpop.f32.mrf.mxu0
    %v480 = vadd.f32 %v192, %v479
    %v481 = vpop.f32.mrf.mxu0
    %v482 = vadd.f32 %v192, %v481
    %483 = vmatmul.bf16.gmra.mxu0 %v309
    %v484 = vpop.f32.mrf.mxu0
    %v485 = vadd.f32 %v192, %v484
    %v486 = vpop.f32.mrf.mxu0
    %v487 = vadd.f32 %v192, %v486
    %488 = vmatmul.bf16.gmra.mxu0 %v310
    %v489 = vpop.f32.mrf.mxu0
    %v490 = vadd.f32 %v192, %v489
    %v491 = vpop.f32.mrf.mxu0
    %v492 = vadd.f32 %v192, %v491
    %493 = vmatmul.bf16.gmra.mxu0 %v311
    %v494 = vpop.f32.mrf.mxu0
    %v495 = vadd.f32 %v192, %v494
    %v496 = vpop.f32.mrf.mxu0
    %v497 = vadd.f32 %v192, %v496
    %498 = vmatmul.bf16.gmra.mxu0 %v312
    %v499 = vpop.f32.mrf.mxu0
    %v500 = vadd.f32 %v192, %v499
    %v501 = vpop.f32.mrf.mxu0
    %v502 = vadd.f32 %v192, %v501
    %503 = vmatmul.bf16.gmra.mxu0 %v313
    %v504 = vpop.f32.mrf.mxu0
    %v505 = vadd.f32 %v192, %v504
    %v506 = vpop.f32.mrf.mxu0
    %v507 = vadd.f32 %v192, %v506
    %508 = vmatmul.bf16.gmra.mxu0 %v314
    %v509 = vpop.f32.mrf.mxu0
    %v510 = vadd.f32 %v192, %v509
    %v511 = vpop.f32.mrf.mxu0
    %v512 = vadd.f32 %v192, %v511
    %513 = vmatmul.bf16.gmra.mxu0 %v315
    %v514 = vpop.f32.mrf.mxu0
    %v515 = vadd.f32 %v192, %v514
    %v516 = vpop.f32.mrf.mxu0
    %v517 = vadd.f32 %v192, %v516
    %518 = vmatmul.bf16.gmra.mxu0 %v316
    %v519 = vpop.f32.mrf.mxu0
    %v520 = vadd.f32 %v192, %v519
    %v521 = vpop.f32.mrf.mxu0
    %522 = vdwg.mxu0
    %v523 = vmax.f32 %v400, 0.0
    %v524 = vmax.f32 %v402, 0.0
    %v525 = vmax.f32 %v405, 0.0
    %v526 = vmax.f32 %v407, 0.0
    %v527 = vmax.f32 %v410, 0.0
    %v528 = vmax.f32 %v412, 0.0
    %v529 = vmax.f32 %v415, 0.0
    %v530 = vmax.f32 %v417, 0.0
    %v531 = vmax.f32 %v420, 0.0
    %v532 = vmax.f32 %v422, 0.0
    %v533 = vmax.f32 %v425, 0.0
    %v534 = vmax.f32 %v427, 0.0
    %v535 = vmax.f32 %v430, 0.0
    %v536 = vmax.f32 %v432, 0.0
    %v537 = vmax.f32 %v435, 0.0
    %v538 = vmax.f32 %v437, 0.0
    %v539 = vmax.f32 %v440, 0.0
    %v540 = vmax.f32 %v442, 0.0
    %v541 = vmax.f32 %v445, 0.0
    %v542 = vmax.f32 %v447, 0.0
    %v543 = vmax.f32 %v450, 0.0
    %v544 = vmax.f32 %v452, 0.0
    %v545 = vmax.f32 %v455, 0.0
    %v546 = vmax.f32 %v457, 0.0
    %v547 = vmax.f32 %v460, 0.0
    %v548 = vmax.f32 %v462, 0.0
    %v549 = vmax.f32 %v465, 0.0
    %v550 = vmax.f32 %v467, 0.0
    %v551 = vmax.f32 %v470, 0.0
    %v552 = vmax.f32 %v472, 0.0
    %v553 = vmax.f32 %v475, 0.0
    %v554 = vmax.f32 %v477, 0.0
    %v555 = vmax.f32 %v480, 0.0
    %v556 = vmax.f32 %v482, 0.0
    %v557 = vmax.f32 %v485, 0.0
    %v558 = vmax.f32 %v487, 0.0
    %v559 = vmax.f32 %v490, 0.0
    %v560 = vmax.f32 %v492, 0.0
    %v561 = vmax.f32 %v495, 0.0
    %v562 = vmax.f32 %v497, 0.0
    %v563 = vmax.f32 %v500, 0.0
    %v564 = vmax.f32 %v502, 0.0
    %v565 = vmax.f32 %v505, 0.0
    %v566 = vmax.f32 %v507, 0.0
    %v567 = vmax.f32 %v510, 0.0
    %v568 = vmax.f32 %v512, 0.0
    %v569 = vmax.f32 %v515, 0.0
    %v570 = vmax.f32 %v517, 0.0
    %v571 = vmax.f32 %v520, 0.0
    %v572 = vpack.c.bf16 %v524, %v523
    %v573 = vpack.c.bf16 %v526, %v525
    %v574 = vpack.c.bf16 %v528, %v527
    %v575 = vpack.c.bf16 %v530, %v529
    %v576 = vpack.c.bf16 %v532, %v531
    %v577 = vpack.c.bf16 %v534, %v533
    %v578 = vpack.c.bf16 %v536, %v535
    %v579 = vpack.c.bf16 %v538, %v537
    %v580 = vpack.c.bf16 %v540, %v539
    %v581 = vpack.c.bf16 %v542, %v541
    %v582 = vpack.c.bf16 %v544, %v543
    %v583 = vpack.c.bf16 %v546, %v545
    %v584 = vpack.c.bf16 %v548, %v547
    %v585 = vpack.c.bf16 %v550, %v549
    %v586 = vpack.c.bf16 %v552, %v551
    %v587 = vpack.c.bf16 %v554, %v553
    %v588 = vpack.c.bf16 %v556, %v555
    %v589 = vpack.c.bf16 %v558, %v557
    %v590 = vpack.c.bf16 %v560, %v559
    %v591 = vpack.c.bf16 %v562, %v561
    %v592 = vpack.c.bf16 %v564, %v563
    %v593 = vpack.c.bf16 %v566, %v565
    %v594 = vpack.c.bf16 %v568, %v567
    %v595 = vpack.c.bf16 %v570, %v569
    %v596 = vpack.c.bf16 %v571, %v571
    %v597 = vld [vmem:[#allocation10] sm:$0xf]
    %v598 = vld [vmem:[#allocation10 + $0x4] sm:$0xf]
    %v599 = vld [vmem:[#allocation10 + $0x8] sm:$0xf]
    %v600 = vld [vmem:[#allocation10 + $0xc] sm:$0xf]
    %v601 = vld [vmem:[#allocation10 + $0x10] sm:$0xf]
    %v602 = vld [vmem:[#allocation10 + $0x14] sm:$0xf]
    %v603 = vld [vmem:[#allocation10 + $0x18] sm:$0xf]
    %v604 = vld [vmem:[#allocation10 + $0x1c] sm:$0xf]
    %v605 = vld [vmem:[#allocation10 + $0x20] sm:$0xf]
    %v606 = vld [vmem:[#allocation10 + $0x24] sm:$0xf]
    %v607 = vld [vmem:[#allocation10 + $0x28] sm:$0xf]
    %v608 = vld [vmem:[#allocation10 + $0x2c] sm:$0xf]
    %v609 = vld [vmem:[#allocation10 + $0x30] sm:$0xf]
    %v610 = vld [vmem:[#allocation10 + $0x34] sm:$0xf]
    %v611 = vld [vmem:[#allocation10 + $0x38] sm:$0xf]
    %v612 = vld [vmem:[#allocation10 + $0x3c] sm:$0xf]
    %v613 = vld [vmem:[%s6] sm:$0x1]
    %v615 = vperm.slane %v613, 0
    %v633 = vunpack.c.l.b16 %v597
    %v634 = vunpack.c.l.b16 %v598
    %v635 = vunpack.c.l.b16 %v599
    %v636 = vunpack.c.l.b16 %v600
    %v637 = vunpack.c.l.b16 %v601
    %v638 = vunpack.c.l.b16 %v602
    %v639 = vunpack.c.l.b16 %v603
    %v640 = vunpack.c.l.b16 %v604
    %v641 = vunpack.c.l.b16 %v605
    %v642 = vunpack.c.l.b16 %v606
    %v643 = vunpack.c.l.b16 %v607
    %v644 = vunpack.c.l.b16 %v608
    %v645 = vunpack.c.l.b16 %v609
    %v646 = vunpack.c.l.b16 %v610
    %v647 = vunpack.c.l.b16 %v611
    %v648 = vunpack.c.l.b16 %v612
    %v649 = vpack.c.b16 %v634, %v633
    %v650 = vpack.c.b16 %v636, %v635
    %v651 = vpack.c.b16 %v638, %v637
    %v652 = vpack.c.b16 %v640, %v639
    %v653 = vpack.c.b16 %v642, %v641
    %v654 = vpack.c.b16 %v644, %v643
    %v655 = vpack.c.b16 %v646, %v645
    %v656 = vpack.c.b16 %v648, %v647
    %665 = vmatpush.bf16.msra.mxu0 %v656
    %666 = vmatpush.bf16.msra.mxu0 %v655
    %667 = vmatpush.bf16.msra.mxu0 %v654
    %668 = vmatpush.bf16.msra.mxu0 %v653
    %669 = vmatpush.bf16.msra.mxu0 %v652
    %670 = vmatpush.bf16.msra.mxu0 %v651
    %671 = vmatpush.bf16.msra.mxu0 %v650
    %672 = vmatpush.bf16.msra.mxu0 %v649
    %673 = vmatmul.bf16.gmra.mxu0 %v572
    %v674 = vpop.f32.mrf.mxu0
    %v675 = vadd.f32 %v615, %v674
    %v676 = vpop.f32.mrf.mxu0
    %v677 = vadd.f32 %v615, %v676
    %678 = vmatmul.bf16.gmra.mxu0 %v573
    %v679 = vpop.f32.mrf.mxu0
    %v680 = vadd.f32 %v615, %v679
    %v681 = vpop.f32.mrf.mxu0
    %v682 = vadd.f32 %v615, %v681
    %683 = vmatmul.bf16.gmra.mxu0 %v574
    %v684 = vpop.f32.mrf.mxu0
    %v685 = vadd.f32 %v615, %v684
    %v686 = vpop.f32.mrf.mxu0
    %v687 = vadd.f32 %v615, %v686
    %688 = vmatmul.bf16.gmra.mxu0 %v575
    %v689 = vpop.f32.mrf.mxu0
    %v690 = vadd.f32 %v615, %v689
    %v691 = vpop.f32.mrf.mxu0
    %v692 = vadd.f32 %v615, %v691
    %693 = vmatmul.bf16.gmra.mxu0 %v576
    %v694 = vpop.f32.mrf.mxu0
    %v695 = vadd.f32 %v615, %v694
    %v696 = vpop.f32.mrf.mxu0
    %v697 = vadd.f32 %v615, %v696
    %698 = vmatmul.bf16.gmra.mxu0 %v577
    %v699 = vpop.f32.mrf.mxu0
    %v700 = vadd.f32 %v615, %v699
    %v701 = vpop.f32.mrf.mxu0
    %v702 = vadd.f32 %v615, %v701
    %703 = vmatmul.bf16.gmra.mxu0 %v578
    %v704 = vpop.f32.mrf.mxu0
    %v705 = vadd.f32 %v615, %v704
    %v706 = vpop.f32.mrf.mxu0
    %v707 = vadd.f32 %v615, %v706
    %708 = vmatmul.bf16.gmra.mxu0 %v579
    %v709 = vpop.f32.mrf.mxu0
    %v710 = vadd.f32 %v615, %v709
    %v711 = vpop.f32.mrf.mxu0
    %v712 = vadd.f32 %v615, %v711
    %713 = vmatmul.bf16.gmra.mxu0 %v580
    %v714 = vpop.f32.mrf.mxu0
    %v715 = vadd.f32 %v615, %v714
    %v716 = vpop.f32.mrf.mxu0
    %v717 = vadd.f32 %v615, %v716
    %718 = vmatmul.bf16.gmra.mxu0 %v581
    %v719 = vpop.f32.mrf.mxu0
    %v720 = vadd.f32 %v615, %v719
    %v721 = vpop.f32.mrf.mxu0
    %v722 = vadd.f32 %v615, %v721
    %723 = vmatmul.bf16.gmra.mxu0 %v582
    %v724 = vpop.f32.mrf.mxu0
    %v725 = vadd.f32 %v615, %v724
    %v726 = vpop.f32.mrf.mxu0
    %v727 = vadd.f32 %v615, %v726
    %728 = vmatmul.bf16.gmra.mxu0 %v583
    %v729 = vpop.f32.mrf.mxu0
    %v730 = vadd.f32 %v615, %v729
    %v731 = vpop.f32.mrf.mxu0
    %v732 = vadd.f32 %v615, %v731
    %733 = vmatmul.bf16.gmra.mxu0 %v584
    %v734 = vpop.f32.mrf.mxu0
    %v735 = vadd.f32 %v615, %v734
    %v736 = vpop.f32.mrf.mxu0
    %v737 = vadd.f32 %v615, %v736
    %738 = vmatmul.bf16.gmra.mxu0 %v585
    %v739 = vpop.f32.mrf.mxu0
    %v740 = vadd.f32 %v615, %v739
    %v741 = vpop.f32.mrf.mxu0
    %v742 = vadd.f32 %v615, %v741
    %743 = vmatmul.bf16.gmra.mxu0 %v586
    %v744 = vpop.f32.mrf.mxu0
    %v745 = vadd.f32 %v615, %v744
    %v746 = vpop.f32.mrf.mxu0
    %v747 = vadd.f32 %v615, %v746
    %748 = vmatmul.bf16.gmra.mxu0 %v587
    %v749 = vpop.f32.mrf.mxu0
    %v750 = vadd.f32 %v615, %v749
    %v751 = vpop.f32.mrf.mxu0
    %v752 = vadd.f32 %v615, %v751
    %753 = vmatmul.bf16.gmra.mxu0 %v588
    %v754 = vpop.f32.mrf.mxu0
    %v755 = vadd.f32 %v615, %v754
    %v756 = vpop.f32.mrf.mxu0
    %v757 = vadd.f32 %v615, %v756
    %758 = vmatmul.bf16.gmra.mxu0 %v589
    %v759 = vpop.f32.mrf.mxu0
    %v760 = vadd.f32 %v615, %v759
    %v761 = vpop.f32.mrf.mxu0
    %v762 = vadd.f32 %v615, %v761
    %763 = vmatmul.bf16.gmra.mxu0 %v590
    %v764 = vpop.f32.mrf.mxu0
    %v765 = vadd.f32 %v615, %v764
    %v766 = vpop.f32.mrf.mxu0
    %v767 = vadd.f32 %v615, %v766
    %768 = vmatmul.bf16.gmra.mxu0 %v591
    %v769 = vpop.f32.mrf.mxu0
    %v770 = vadd.f32 %v615, %v769
    %v771 = vpop.f32.mrf.mxu0
    %v772 = vadd.f32 %v615, %v771
    %773 = vmatmul.bf16.gmra.mxu0 %v592
    %v774 = vpop.f32.mrf.mxu0
    %v775 = vadd.f32 %v615, %v774
    %v776 = vpop.f32.mrf.mxu0
    %v777 = vadd.f32 %v615, %v776
    %778 = vmatmul.bf16.gmra.mxu0 %v593
    %v779 = vpop.f32.mrf.mxu0
    %v780 = vadd.f32 %v615, %v779
    %v781 = vpop.f32.mrf.mxu0
    %v782 = vadd.f32 %v615, %v781
    %783 = vmatmul.bf16.gmra.mxu0 %v594
    %v784 = vpop.f32.mrf.mxu0
    %v785 = vadd.f32 %v615, %v784
    %v786 = vpop.f32.mrf.mxu0
    %v787 = vadd.f32 %v615, %v786
    %788 = vmatmul.bf16.gmra.mxu0 %v595
    %v789 = vpop.f32.mrf.mxu0
    %v790 = vadd.f32 %v615, %v789
    %v791 = vpop.f32.mrf.mxu0
    %v792 = vadd.f32 %v615, %v791
    %793 = vmatmul.bf16.gmra.mxu0 %v596
    %v794 = vpop.f32.mrf.mxu0
    %v795 = vadd.f32 %v615, %v794
    %v796 = vpop.f32.mrf.mxu0
    %797 = vdwg.mxu0
    %v798 = vmax.f32 %v675, 0.0
    %v799 = vmax.f32 %v677, 0.0
    %v800 = vmax.f32 %v680, 0.0
    %v801 = vmax.f32 %v682, 0.0
    %v802 = vmax.f32 %v685, 0.0
    %v803 = vmax.f32 %v687, 0.0
    %v804 = vmax.f32 %v690, 0.0
    %v805 = vmax.f32 %v692, 0.0
    %v806 = vmax.f32 %v695, 0.0
    %v807 = vmax.f32 %v697, 0.0
    %v808 = vmax.f32 %v700, 0.0
    %v809 = vmax.f32 %v702, 0.0
    %v810 = vmax.f32 %v705, 0.0
    %v811 = vmax.f32 %v707, 0.0
    %v812 = vmax.f32 %v710, 0.0
    %v813 = vmax.f32 %v712, 0.0
    %v814 = vmax.f32 %v715, 0.0
    %v815 = vmax.f32 %v717, 0.0
    %v816 = vmax.f32 %v720, 0.0
    %v817 = vmax.f32 %v722, 0.0
    %v818 = vmax.f32 %v725, 0.0
    %v819 = vmax.f32 %v727, 0.0
    %v820 = vmax.f32 %v730, 0.0
    %v821 = vmax.f32 %v732, 0.0
    %v822 = vmax.f32 %v735, 0.0
    %v823 = vmax.f32 %v737, 0.0
    %v824 = vmax.f32 %v740, 0.0
    %v825 = vmax.f32 %v742, 0.0
    %v826 = vmax.f32 %v745, 0.0
    %v827 = vmax.f32 %v747, 0.0
    %v828 = vmax.f32 %v750, 0.0
    %v829 = vmax.f32 %v752, 0.0
    %v830 = vmax.f32 %v755, 0.0
    %v831 = vmax.f32 %v757, 0.0
    %v832 = vmax.f32 %v760, 0.0
    %v833 = vmax.f32 %v762, 0.0
    %v834 = vmax.f32 %v765, 0.0
    %v835 = vmax.f32 %v767, 0.0
    %v836 = vmax.f32 %v770, 0.0
    %v837 = vmax.f32 %v772, 0.0
    %v838 = vmax.f32 %v775, 0.0
    %v839 = vmax.f32 %v777, 0.0
    %v840 = vmax.f32 %v780, 0.0
    %v841 = vmax.f32 %v782, 0.0
    %v842 = vmax.f32 %v785, 0.0
    %v843 = vmax.f32 %v787, 0.0
    %v844 = vmax.f32 %v790, 0.0
    %v845 = vmax.f32 %v792, 0.0
    %v846 = vmax.f32 %v795, 0.0
    %v847 = vld [vmem:[#allocation5] sm:$0xf]
    %v848 = vld [vmem:[#allocation5 + $0x4] sm:$0xf]
    %v849 = vld [vmem:[#allocation5 + $0x8] sm:$0xf]
    %v850 = vld [vmem:[#allocation5 + $0xc] sm:$0xf]
    %v851 = vld [vmem:[#allocation5 + $0x10] sm:$0xf]
    %v852 = vld [vmem:[#allocation5 + $0x14] sm:$0xf]
    %v853 = vld [vmem:[#allocation5 + $0x18] sm:$0xf]
    %v854 = vld [vmem:[#allocation5 + $0x1c] sm:$0xf]
    %v855 = vld [vmem:[#allocation5 + $0x20] sm:$0xf]
    %v856 = vld [vmem:[#allocation5 + $0x24] sm:$0xf]
    %v857 = vld [vmem:[#allocation5 + $0x28] sm:$0xf]
    %v858 = vld [vmem:[#allocation5 + $0x2c] sm:$0xf]
    %v859 = vld [vmem:[#allocation5 + $0x30] sm:$0xf]
    %v860 = vld [vmem:[#allocation5 + $0x34] sm:$0xf]
    %v861 = vld [vmem:[#allocation5 + $0x38] sm:$0xf]
    %v862 = vld [vmem:[#allocation5 + $0x3c] sm:$0xf]
    %v863 = vld [vmem:[#allocation5 + $0x40] sm:$0xf]
    %v864 = vld [vmem:[#allocation5 + $0x44] sm:$0xf]
    %v865 = vld [vmem:[#allocation5 + $0x48] sm:$0xf]
    %v866 = vld [vmem:[#allocation5 + $0x4c] sm:$0xf]
    %v867 = vld [vmem:[#allocation5 + $0x50] sm:$0xf]
    %v868 = vld [vmem:[#allocation5 + $0x54] sm:$0xf]
    %v869 = vld [vmem:[#allocation5 + $0x58] sm:$0xf]
    %v870 = vld [vmem:[#allocation5 + $0x5c] sm:$0xf]
    %v871 = vld [vmem:[#allocation5 + $0x60] sm:$0xf]
    %v872 = vld [vmem:[#allocation5 + $0x64] sm:$0xf]
    %v873 = vld [vmem:[#allocation5 + $0x68] sm:$0xf]
    %v874 = vld [vmem:[#allocation5 + $0x6c] sm:$0xf]
    %v875 = vld [vmem:[#allocation5 + $0x70] sm:$0xf]
    %v876 = vld [vmem:[#allocation5 + $0x74] sm:$0xf]
    %v877 = vld [vmem:[#allocation5 + $0x78] sm:$0xf]
    %v878 = vld [vmem:[#allocation5 + $0x7c] sm:$0xf]
    %v879 = vld [vmem:[#allocation5 + $0x80] sm:$0xf]
    %v880 = vld [vmem:[#allocation5 + $0x84] sm:$0xf]
    %v881 = vld [vmem:[#allocation5 + $0x88] sm:$0xf]
    %v882 = vld [vmem:[#allocation5 + $0x8c] sm:$0xf]
    %v883 = vld [vmem:[#allocation5 + $0x90] sm:$0xf]
    %v884 = vld [vmem:[#allocation5 + $0x94] sm:$0xf]
    %v885 = vld [vmem:[#allocation5 + $0x98] sm:$0xf]
    %v886 = vld [vmem:[#allocation5 + $0x9c] sm:$0xf]
    %v887 = vld [vmem:[#allocation5 + $0xa0] sm:$0xf]
    %v888 = vld [vmem:[#allocation5 + $0xa4] sm:$0xf]
    %v889 = vld [vmem:[#allocation5 + $0xa8] sm:$0xf]
    %v890 = vld [vmem:[#allocation5 + $0xac] sm:$0xf]
    %v891 = vld [vmem:[#allocation5 + $0xb0] sm:$0xf]
    %v892 = vld [vmem:[#allocation5 + $0xb4] sm:$0xf]
    %v893 = vld [vmem:[#allocation5 + $0xb8] sm:$0xf]
    %v894 = vld [vmem:[#allocation5 + $0xbc] sm:$0xf]
    %v895 = vld [vmem:[#allocation5 + $0xc0] sm:$0xf]
    %v896 = vld [vmem:[#allocation11] sm:$0xf]
    %v897 = vld [vmem:[#allocation11 + $0x4] sm:$0xf]
    %v898 = vld [vmem:[#allocation11 + $0x8] sm:$0xf]
    %v899 = vld [vmem:[#allocation11 + $0xc] sm:$0xf]
    %v900 = vld [vmem:[#allocation11 + $0x10] sm:$0xf]
    %v901 = vld [vmem:[#allocation11 + $0x14] sm:$0xf]
    %v902 = vld [vmem:[#allocation11 + $0x18] sm:$0xf]
    %v903 = vld [vmem:[#allocation11 + $0x1c] sm:$0xf]
    %v904 = vld [vmem:[#allocation11 + $0x20] sm:$0xf]
    %v905 = vld [vmem:[#allocation11 + $0x24] sm:$0xf]
    %v906 = vld [vmem:[#allocation11 + $0x28] sm:$0xf]
    %v907 = vld [vmem:[#allocation11 + $0x2c] sm:$0xf]
    %v908 = vld [vmem:[#allocation11 + $0x30] sm:$0xf]
    %v909 = vld [vmem:[#allocation11 + $0x34] sm:$0xf]
    %v910 = vld [vmem:[#allocation11 + $0x38] sm:$0xf]
    %v911 = vld [vmem:[#allocation11 + $0x3c] sm:$0xf]
    %v912 = vld [vmem:[%s8] sm:$0x1]
    %v914 = vperm.slane %v912, 0
    %v965 = vunpack.c.l.b16 %v847
    %v966 = vunpack.c.l.b16 %v848
    %v967 = vunpack.c.l.b16 %v849
    %v968 = vunpack.c.l.b16 %v850
    %v969 = vunpack.c.l.b16 %v851
    %v970 = vunpack.c.l.b16 %v852
    %v971 = vunpack.c.l.b16 %v853
    %v972 = vunpack.c.l.b16 %v854
    %v973 = vunpack.c.l.b16 %v855
    %v974 = vunpack.c.l.b16 %v856
    %v975 = vunpack.c.l.b16 %v857
    %v976 = vunpack.c.l.b16 %v858
    %v977 = vunpack.c.l.b16 %v859
    %v978 = vunpack.c.l.b16 %v860
    %v979 = vunpack.c.l.b16 %v861
    %v980 = vunpack.c.l.b16 %v862
    %v981 = vunpack.c.l.b16 %v863
    %v982 = vunpack.c.l.b16 %v864
    %v983 = vunpack.c.l.b16 %v865
    %v984 = vunpack.c.l.b16 %v866
    %v985 = vunpack.c.l.b16 %v867
    %v986 = vunpack.c.l.b16 %v868
    %v987 = vunpack.c.l.b16 %v869
    %v988 = vunpack.c.l.b16 %v870
    %v989 = vunpack.c.l.b16 %v871
    %v990 = vunpack.c.l.b16 %v872
    %v991 = vunpack.c.l.b16 %v873
    %v992 = vunpack.c.l.b16 %v874
    %v993 = vunpack.c.l.b16 %v875
    %v994 = vunpack.c.l.b16 %v876
    %v995 = vunpack.c.l.b16 %v877
    %v996 = vunpack.c.l.b16 %v878
    %v997 = vunpack.c.l.b16 %v879
    %v998 = vunpack.c.l.b16 %v880
    %v999 = vunpack.c.l.b16 %v881
    %v1000 = vunpack.c.l.b16 %v882
    %v1001 = vunpack.c.l.b16 %v883
    %v1002 = vunpack.c.l.b16 %v884
    %v1003 = vunpack.c.l.b16 %v885
    %v1004 = vunpack.c.l.b16 %v886
    %v1005 = vunpack.c.l.b16 %v887
    %v1006 = vunpack.c.l.b16 %v888
    %v1007 = vunpack.c.l.b16 %v889
    %v1008 = vunpack.c.l.b16 %v890
    %v1009 = vunpack.c.l.b16 %v891
    %v1010 = vunpack.c.l.b16 %v892
    %v1011 = vunpack.c.l.b16 %v893
    %v1012 = vunpack.c.l.b16 %v894
    %v1013 = vunpack.c.l.b16 %v895
    %v1014 = vpack.c.b16 %v966, %v965
    %v1015 = vpack.c.b16 %v968, %v967
    %v1016 = vpack.c.b16 %v970, %v969
    %v1017 = vpack.c.b16 %v972, %v971
    %v1018 = vpack.c.b16 %v974, %v973
    %v1019 = vpack.c.b16 %v976, %v975
    %v1020 = vpack.c.b16 %v978, %v977
    %v1021 = vpack.c.b16 %v980, %v979
    %v1022 = vpack.c.b16 %v982, %v981
    %v1023 = vpack.c.b16 %v984, %v983
    %v1024 = vpack.c.b16 %v986, %v985
    %v1025 = vpack.c.b16 %v988, %v987
    %v1026 = vpack.c.b16 %v990, %v989
    %v1027 = vpack.c.b16 %v992, %v991
    %v1028 = vpack.c.b16 %v994, %v993
    %v1029 = vpack.c.b16 %v996, %v995
    %v1030 = vpack.c.b16 %v998, %v997
    %v1031 = vpack.c.b16 %v1000, %v999
    %v1032 = vpack.c.b16 %v1002, %v1001
    %v1033 = vpack.c.b16 %v1004, %v1003
    %v1034 = vpack.c.b16 %v1006, %v1005
    %v1035 = vpack.c.b16 %v1008, %v1007
    %v1036 = vpack.c.b16 %v1010, %v1009
    %v1037 = vpack.c.b16 %v1012, %v1011
    %v1038 = vpack.c.b16 %v1013, %v1013
    %v1080 = vunpack.c.l.b16 %v896
    %v1081 = vunpack.c.l.b16 %v897
    %v1082 = vunpack.c.l.b16 %v898
    %v1083 = vunpack.c.l.b16 %v899
    %v1084 = vunpack.c.l.b16 %v900
    %v1085 = vunpack.c.l.b16 %v901
    %v1086 = vunpack.c.l.b16 %v902
    %v1087 = vunpack.c.l.b16 %v903
    %v1088 = vunpack.c.l.b16 %v904
    %v1089 = vunpack.c.l.b16 %v905
    %v1090 = vunpack.c.l.b16 %v906
    %v1091 = vunpack.c.l.b16 %v907
    %v1092 = vunpack.c.l.b16 %v908
    %v1093 = vunpack.c.l.b16 %v909
    %v1094 = vunpack.c.l.b16 %v910
    %v1095 = vunpack.c.l.b16 %v911
    %v1096 = vpack.c.b16 %v1081, %v1080
    %v1097 = vpack.c.b16 %v1083, %v1082
    %v1098 = vpack.c.b16 %v1085, %v1084
    %v1099 = vpack.c.b16 %v1087, %v1086
    %v1100 = vpack.c.b16 %v1089, %v1088
    %v1101 = vpack.c.b16 %v1091, %v1090
    %v1102 = vpack.c.b16 %v1093, %v1092
    %v1103 = vpack.c.b16 %v1095, %v1094
    %1112 = vmatpush.bf16.msra.mxu0 %v1103
    %1113 = vmatpush.bf16.msra.mxu0 %v1102
    %1114 = vmatpush.bf16.msra.mxu0 %v1101
    %1115 = vmatpush.bf16.msra.mxu0 %v1100
    %1116 = vmatpush.bf16.msra.mxu0 %v1099
    %1117 = vmatpush.bf16.msra.mxu0 %v1098
    %1118 = vmatpush.bf16.msra.mxu0 %v1097
    %1119 = vmatpush.bf16.msra.mxu0 %v1096
    %1120 = vmatmul.bf16.gmra.mxu0 %v1014
    %v1121 = vpop.f32.mrf.mxu0
    %v1122 = vadd.f32 %v914, %v1121
    %v1123 = vpop.f32.mrf.mxu0
    %v1124 = vadd.f32 %v914, %v1123
    %1125 = vmatmul.bf16.gmra.mxu0 %v1015
    %v1126 = vpop.f32.mrf.mxu0
    %v1127 = vadd.f32 %v914, %v1126
    %v1128 = vpop.f32.mrf.mxu0
    %v1129 = vadd.f32 %v914, %v1128
    %1130 = vmatmul.bf16.gmra.mxu0 %v1016
    %v1131 = vpop.f32.mrf.mxu0
    %v1132 = vadd.f32 %v914, %v1131
    %v1133 = vpop.f32.mrf.mxu0
    %v1134 = vadd.f32 %v914, %v1133
    %1135 = vmatmul.bf16.gmra.mxu0 %v1017
    %v1136 = vpop.f32.mrf.mxu0
    %v1137 = vadd.f32 %v914, %v1136
    %v1138 = vpop.f32.mrf.mxu0
    %v1139 = vadd.f32 %v914, %v1138
    %1140 = vmatmul.bf16.gmra.mxu0 %v1018
    %v1141 = vpop.f32.mrf.mxu0
    %v1142 = vadd.f32 %v914, %v1141
    %v1143 = vpop.f32.mrf.mxu0
    %v1144 = vadd.f32 %v914, %v1143
    %1145 = vmatmul.bf16.gmra.mxu0 %v1019
    %v1146 = vpop.f32.mrf.mxu0
    %v1147 = vadd.f32 %v914, %v1146
    %v1148 = vpop.f32.mrf.mxu0
    %v1149 = vadd.f32 %v914, %v1148
    %1150 = vmatmul.bf16.gmra.mxu0 %v1020
    %v1151 = vpop.f32.mrf.mxu0
    %v1152 = vadd.f32 %v914, %v1151
    %v1153 = vpop.f32.mrf.mxu0
    %v1154 = vadd.f32 %v914, %v1153
    %1155 = vmatmul.bf16.gmra.mxu0 %v1021
    %v1156 = vpop.f32.mrf.mxu0
    %v1157 = vadd.f32 %v914, %v1156
    %v1158 = vpop.f32.mrf.mxu0
    %v1159 = vadd.f32 %v914, %v1158
    %1160 = vmatmul.bf16.gmra.mxu0 %v1022
    %v1161 = vpop.f32.mrf.mxu0
    %v1162 = vadd.f32 %v914, %v1161
    %v1163 = vpop.f32.mrf.mxu0
    %v1164 = vadd.f32 %v914, %v1163
    %1165 = vmatmul.bf16.gmra.mxu0 %v1023
    %v1166 = vpop.f32.mrf.mxu0
    %v1167 = vadd.f32 %v914, %v1166
    %v1168 = vpop.f32.mrf.mxu0
    %v1169 = vadd.f32 %v914, %v1168
    %1170 = vmatmul.bf16.gmra.mxu0 %v1024
    %v1171 = vpop.f32.mrf.mxu0
    %v1172 = vadd.f32 %v914, %v1171
    %v1173 = vpop.f32.mrf.mxu0
    %v1174 = vadd.f32 %v914, %v1173
    %1175 = vmatmul.bf16.gmra.mxu0 %v1025
    %v1176 = vpop.f32.mrf.mxu0
    %v1177 = vadd.f32 %v914, %v1176
    %v1178 = vpop.f32.mrf.mxu0
    %v1179 = vadd.f32 %v914, %v1178
    %1180 = vmatmul.bf16.gmra.mxu0 %v1026
    %v1181 = vpop.f32.mrf.mxu0
    %v1182 = vadd.f32 %v914, %v1181
    %v1183 = vpop.f32.mrf.mxu0
    %v1184 = vadd.f32 %v914, %v1183
    %1185 = vmatmul.bf16.gmra.mxu0 %v1027
    %v1186 = vpop.f32.mrf.mxu0
    %v1187 = vadd.f32 %v914, %v1186
    %v1188 = vpop.f32.mrf.mxu0
    %v1189 = vadd.f32 %v914, %v1188
    %1190 = vmatmul.bf16.gmra.mxu0 %v1028
    %v1191 = vpop.f32.mrf.mxu0
    %v1192 = vadd.f32 %v914, %v1191
    %v1193 = vpop.f32.mrf.mxu0
    %v1194 = vadd.f32 %v914, %v1193
    %1195 = vmatmul.bf16.gmra.mxu0 %v1029
    %v1196 = vpop.f32.mrf.mxu0
    %v1197 = vadd.f32 %v914, %v1196
    %v1198 = vpop.f32.mrf.mxu0
    %v1199 = vadd.f32 %v914, %v1198
    %1200 = vmatmul.bf16.gmra.mxu0 %v1030
    %v1201 = vpop.f32.mrf.mxu0
    %v1202 = vadd.f32 %v914, %v1201
    %v1203 = vpop.f32.mrf.mxu0
    %v1204 = vadd.f32 %v914, %v1203
    %1205 = vmatmul.bf16.gmra.mxu0 %v1031
    %v1206 = vpop.f32.mrf.mxu0
    %v1207 = vadd.f32 %v914, %v1206
    %v1208 = vpop.f32.mrf.mxu0
    %v1209 = vadd.f32 %v914, %v1208
    %1210 = vmatmul.bf16.gmra.mxu0 %v1032
    %v1211 = vpop.f32.mrf.mxu0
    %v1212 = vadd.f32 %v914, %v1211
    %v1213 = vpop.f32.mrf.mxu0
    %v1214 = vadd.f32 %v914, %v1213
    %1215 = vmatmul.bf16.gmra.mxu0 %v1033
    %v1216 = vpop.f32.mrf.mxu0
    %v1217 = vadd.f32 %v914, %v1216
    %v1218 = vpop.f32.mrf.mxu0
    %v1219 = vadd.f32 %v914, %v1218
    %1220 = vmatmul.bf16.gmra.mxu0 %v1034
    %v1221 = vpop.f32.mrf.mxu0
    %v1222 = vadd.f32 %v914, %v1221
    %v1223 = vpop.f32.mrf.mxu0
    %v1224 = vadd.f32 %v914, %v1223
    %1225 = vmatmul.bf16.gmra.mxu0 %v1035
    %v1226 = vpop.f32.mrf.mxu0
    %v1227 = vadd.f32 %v914, %v1226
    %v1228 = vpop.f32.mrf.mxu0
    %v1229 = vadd.f32 %v914, %v1228
    %1230 = vmatmul.bf16.gmra.mxu0 %v1036
    %v1231 = vpop.f32.mrf.mxu0
    %v1232 = vadd.f32 %v914, %v1231
    %v1233 = vpop.f32.mrf.mxu0
    %v1234 = vadd.f32 %v914, %v1233
    %1235 = vmatmul.bf16.gmra.mxu0 %v1037
    %v1236 = vpop.f32.mrf.mxu0
    %v1237 = vadd.f32 %v914, %v1236
    %v1238 = vpop.f32.mrf.mxu0
    %v1239 = vadd.f32 %v914, %v1238
    %1240 = vmatmul.bf16.gmra.mxu0 %v1038
    %v1241 = vpop.f32.mrf.mxu0
    %v1242 = vadd.f32 %v914, %v1241
    %v1243 = vpop.f32.mrf.mxu0
    %1244 = vdwg.mxu0
    %v1245 = vmax.f32 %v1122, 0.0
    %v1246 = vmax.f32 %v1124, 0.0
    %v1247 = vmax.f32 %v1127, 0.0
    %v1248 = vmax.f32 %v1129, 0.0
    %v1249 = vmax.f32 %v1132, 0.0
    %v1250 = vmax.f32 %v1134, 0.0
    %v1251 = vmax.f32 %v1137, 0.0
    %v1252 = vmax.f32 %v1139, 0.0
    %v1253 = vmax.f32 %v1142, 0.0
    %v1254 = vmax.f32 %v1144, 0.0
    %v1255 = vmax.f32 %v1147, 0.0
    %v1256 = vmax.f32 %v1149, 0.0
    %v1257 = vmax.f32 %v1152, 0.0
    %v1258 = vmax.f32 %v1154, 0.0
    %v1259 = vmax.f32 %v1157, 0.0
    %v1260 = vmax.f32 %v1159, 0.0
    %v1261 = vmax.f32 %v1162, 0.0
    %v1262 = vmax.f32 %v1164, 0.0
    %v1263 = vmax.f32 %v1167, 0.0
    %v1264 = vmax.f32 %v1169, 0.0
    %v1265 = vmax.f32 %v1172, 0.0
    %v1266 = vmax.f32 %v1174, 0.0
    %v1267 = vmax.f32 %v1177, 0.0
    %v1268 = vmax.f32 %v1179, 0.0
    %v1269 = vmax.f32 %v1182, 0.0
    %v1270 = vmax.f32 %v1184, 0.0
    %v1271 = vmax.f32 %v1187, 0.0
    %v1272 = vmax.f32 %v1189, 0.0
    %v1273 = vmax.f32 %v1192, 0.0
    %v1274 = vmax.f32 %v1194, 0.0
    %v1275 = vmax.f32 %v1197, 0.0
    %v1276 = vmax.f32 %v1199, 0.0
    %v1277 = vmax.f32 %v1202, 0.0
    %v1278 = vmax.f32 %v1204, 0.0
    %v1279 = vmax.f32 %v1207, 0.0
    %v1280 = vmax.f32 %v1209, 0.0
    %v1281 = vmax.f32 %v1212, 0.0
    %v1282 = vmax.f32 %v1214, 0.0
    %v1283 = vmax.f32 %v1217, 0.0
    %v1284 = vmax.f32 %v1219, 0.0
    %v1285 = vmax.f32 %v1222, 0.0
    %v1286 = vmax.f32 %v1224, 0.0
    %v1287 = vmax.f32 %v1227, 0.0
    %v1288 = vmax.f32 %v1229, 0.0
    %v1289 = vmax.f32 %v1232, 0.0
    %v1290 = vmax.f32 %v1234, 0.0
    %v1291 = vmax.f32 %v1237, 0.0
    %v1292 = vmax.f32 %v1239, 0.0
    %v1293 = vmax.f32 %v1242, 0.0
    %v1294 = vadd.f32 %v798, %v1245
    %v1295 = vadd.f32 %v799, %v1246
    %v1296 = vadd.f32 %v800, %v1247
    %v1297 = vadd.f32 %v801, %v1248
    %v1298 = vadd.f32 %v802, %v1249
    %v1299 = vadd.f32 %v803, %v1250
    %v1300 = vadd.f32 %v804, %v1251
    %v1301 = vadd.f32 %v805, %v1252
    %v1302 = vadd.f32 %v806, %v1253
    %v1303 = vadd.f32 %v807, %v1254
    %v1304 = vadd.f32 %v808, %v1255
    %v1305 = vadd.f32 %v809, %v1256
    %v1306 = vadd.f32 %v810, %v1257
    %v1307 = vadd.f32 %v811, %v1258
    %v1308 = vadd.f32 %v812, %v1259
    %v1309 = vadd.f32 %v813, %v1260
    %v1310 = vadd.f32 %v814, %v1261
    %v1311 = vadd.f32 %v815, %v1262
    %v1312 = vadd.f32 %v816, %v1263
    %v1313 = vadd.f32 %v817, %v1264
    %v1314 = vadd.f32 %v818, %v1265
    %v1315 = vadd.f32 %v819, %v1266
    %v1316 = vadd.f32 %v820, %v1267
    %v1317 = vadd.f32 %v821, %v1268
    %v1318 = vadd.f32 %v822, %v1269
    %v1319 = vadd.f32 %v823, %v1270
    %v1320 = vadd.f32 %v824, %v1271
    %v1321 = vadd.f32 %v825, %v1272
    %v1322 = vadd.f32 %v826, %v1273
    %v1323 = vadd.f32 %v827, %v1274
    %v1324 = vadd.f32 %v828, %v1275
    %v1325 = vadd.f32 %v829, %v1276
    %v1326 = vadd.f32 %v830, %v1277
    %v1327 = vadd.f32 %v831, %v1278
    %v1328 = vadd.f32 %v832, %v1279
    %v1329 = vadd.f32 %v833, %v1280
    %v1330 = vadd.f32 %v834, %v1281
    %v1331 = vadd.f32 %v835, %v1282
    %v1332 = vadd.f32 %v836, %v1283
    %v1333 = vadd.f32 %v837, %v1284
    %v1334 = vadd.f32 %v838, %v1285
    %v1335 = vadd.f32 %v839, %v1286
    %v1336 = vadd.f32 %v840, %v1287
    %v1337 = vadd.f32 %v841, %v1288
    %v1338 = vadd.f32 %v842, %v1289
    %v1339 = vadd.f32 %v843, %v1290
    %v1340 = vadd.f32 %v844, %v1291
    %v1341 = vadd.f32 %v845, %v1292
    %v1342 = vadd.f32 %v846, %v1293
    %v1343 = vmax.f32 %v1294, 0.0
    %v1344 = vmax.f32 %v1295, 0.0
    %v1345 = vmax.f32 %v1296, 0.0
    %v1346 = vmax.f32 %v1297, 0.0
    %v1347 = vmax.f32 %v1298, 0.0
    %v1348 = vmax.f32 %v1299, 0.0
    %v1349 = vmax.f32 %v1300, 0.0
    %v1350 = vmax.f32 %v1301, 0.0
    %v1351 = vmax.f32 %v1302, 0.0
    %v1352 = vmax.f32 %v1303, 0.0
    %v1353 = vmax.f32 %v1304, 0.0
    %v1354 = vmax.f32 %v1305, 0.0
    %v1355 = vmax.f32 %v1306, 0.0
    %v1356 = vmax.f32 %v1307, 0.0
    %v1357 = vmax.f32 %v1308, 0.0
    %v1358 = vmax.f32 %v1309, 0.0
    %v1359 = vmax.f32 %v1310, 0.0
    %v1360 = vmax.f32 %v1311, 0.0
    %v1361 = vmax.f32 %v1312, 0.0
    %v1362 = vmax.f32 %v1313, 0.0
    %v1363 = vmax.f32 %v1314, 0.0
    %v1364 = vmax.f32 %v1315, 0.0
    %v1365 = vmax.f32 %v1316, 0.0
    %v1366 = vmax.f32 %v1317, 0.0
    %v1367 = vmax.f32 %v1318, 0.0
    %v1368 = vmax.f32 %v1319, 0.0
    %v1369 = vmax.f32 %v1320, 0.0
    %v1370 = vmax.f32 %v1321, 0.0
    %v1371 = vmax.f32 %v1322, 0.0
    %v1372 = vmax.f32 %v1323, 0.0
    %v1373 = vmax.f32 %v1324, 0.0
    %v1374 = vmax.f32 %v1325, 0.0
    %v1375 = vmax.f32 %v1326, 0.0
    %v1376 = vmax.f32 %v1327, 0.0
    %v1377 = vmax.f32 %v1328, 0.0
    %v1378 = vmax.f32 %v1329, 0.0
    %v1379 = vmax.f32 %v1330, 0.0
    %v1380 = vmax.f32 %v1331, 0.0
    %v1381 = vmax.f32 %v1332, 0.0
    %v1382 = vmax.f32 %v1333, 0.0
    %v1383 = vmax.f32 %v1334, 0.0
    %v1384 = vmax.f32 %v1335, 0.0
    %v1385 = vmax.f32 %v1336, 0.0
    %v1386 = vmax.f32 %v1337, 0.0
    %v1387 = vmax.f32 %v1338, 0.0
    %v1388 = vmax.f32 %v1339, 0.0
    %v1389 = vmax.f32 %v1340, 0.0
    %v1390 = vmax.f32 %v1341, 0.0
    %v1391 = vmax.f32 %v1342, 0.0
    %v1392 = vld [vmem:[#allocation7] sm:$0xff]
    %v1393 = vld [vmem:[#allocation7 + $0x8] sm:$0xff]
    %v1394 = vld [vmem:[#allocation7 + $0x10] sm:$0xff]
    %v1395 = vld [vmem:[#allocation7 + $0x18] sm:$0xff]
    %vm1396 = vcmask 64512
    %v1398 = vsel %vm1396, %v1395, 0
    %1400 = vmatpush.msra.mxu0 %v1358
    %1401 = vmatpush.msra.mxu0 %v1357
    %1402 = vmatpush.msra.mxu0 %v1356
    %1403 = vmatpush.msra.mxu0 %v1355
    %1404 = vmatpush.msra.mxu0 %v1354
    %1405 = vmatpush.msra.mxu0 %v1353
    %1406 = vmatpush.msra.mxu0 %v1352
    %1407 = vmatpush.msra.mxu0 %v1351
    %1408 = vmatpush.msra.mxu0 %v1350
    %1409 = vmatpush.msra.mxu0 %v1349
    %1410 = vmatpush.msra.mxu0 %v1348
    %1411 = vmatpush.msra.mxu0 %v1347
    %1412 = vmatpush.msra.mxu0 %v1346
    %1413 = vmatpush.msra.mxu0 %v1345
    %1414 = vmatpush.msra.mxu0 %v1344
    %1415 = vmatpush.msra.mxu0 %v1343
    %1416 = vmatmul.f32.gmra.mxu0 %v1392
    %v1417 = vpop.f32.mrf.mxu0
    %v1418 = vadd.f32 0.0, %v1417
    %1419 = vdwg.mxu0
    %1420 = vmatpush.msra.mxu0 %v1374
    %1421 = vmatpush.msra.mxu0 %v1373
    %1422 = vmatpush.msra.mxu0 %v1372
    %1423 = vmatpush.msra.mxu0 %v1371
    %1424 = vmatpush.msra.mxu0 %v1370
    %1425 = vmatpush.msra.mxu0 %v1369
    %1426 = vmatpush.msra.mxu0 %v1368
    %1427 = vmatpush.msra.mxu0 %v1367
    %1428 = vmatpush.msra.mxu0 %v1366
    %1429 = vmatpush.msra.mxu0 %v1365
    %1430 = vmatpush.msra.mxu0 %v1364
    %1431 = vmatpush.msra.mxu0 %v1363
    %1432 = vmatpush.msra.mxu0 %v1362
    %1433 = vmatpush.msra.mxu0 %v1361
    %1434 = vmatpush.msra.mxu0 %v1360
    %1435 = vmatpush.msra.mxu0 %v1359
    %1436 = vmatmul.f32.gmra.mxu0 %v1393
    %v1437 = vpop.f32.mrf.mxu0
    %v1438 = vadd.f32 %v1418, %v1437
    %1439 = vdwg.mxu0
    %1440 = vmatpush.msra.mxu0 %v1390
    %1441 = vmatpush.msra.mxu0 %v1389
    %1442 = vmatpush.msra.mxu0 %v1388
    %1443 = vmatpush.msra.mxu0 %v1387
    %1444 = vmatpush.msra.mxu0 %v1386
    %1445 = vmatpush.msra.mxu0 %v1385
    %1446 = vmatpush.msra.mxu0 %v1384
    %1447 = vmatpush.msra.mxu0 %v1383
    %1448 = vmatpush.msra.mxu0 %v1382
    %1449 = vmatpush.msra.mxu0 %v1381
    %1450 = vmatpush.msra.mxu0 %v1380
    %1451 = vmatpush.msra.mxu0 %v1379
    %1452 = vmatpush.msra.mxu0 %v1378
    %1453 = vmatpush.msra.mxu0 %v1377
    %1454 = vmatpush.msra.mxu0 %v1376
    %1455 = vmatpush.msra.mxu0 %v1375
    %1456 = vmatmul.f32.gmra.mxu0 %v1394
    %v1457 = vpop.f32.mrf.mxu0
    %v1458 = vadd.f32 %v1438, %v1457
    %1459 = vdwg.mxu0
    %1460 = vmatpush.msra.mxu0 0.0
    %1461 = vmatpush.msra.mxu0 0.0
    %1462 = vmatpush.msra.mxu0 0.0
    %1463 = vmatpush.msra.mxu0 0.0
    %1464 = vmatpush.msra.mxu0 0.0
    %1465 = vmatpush.msra.mxu0 0.0
    %1466 = vmatpush.msra.mxu0 0.0
    %1467 = vmatpush.msra.mxu0 0.0
    %1468 = vmatpush.msra.mxu0 0.0
    %1469 = vmatpush.msra.mxu0 0.0
    %1470 = vmatpush.msra.mxu0 0.0
    %1471 = vmatpush.msra.mxu0 0.0
    %1472 = vmatpush.msra.mxu0 0.0
    %1473 = vmatpush.msra.mxu0 0.0
    %1474 = vmatpush.msra.mxu0 0.0
    %1475 = vmatpush.msra.mxu0 %v1391
    %1476 = vmatmul.f32.gmra.mxu0 %v1398
    %v1477 = vpop.f32.mrf.mxu0
    %v1478 = vadd.f32 %v1458, %v1477
    %1479 = vdwg.mxu0
    %1480 = vst [vmem:[#allocation13] sm:$0xff] %v1478
    // Predicated region
    $region62: #{tpu_custom_call.1} parent=1 // pred_check
      _
    $region63: #{tpu_custom_call.1} parent=1 // pred_check_branch
      %1482 = sbr.rel (0) target = $region65
    $region64: #{tpu_custom_call.1} parent=1 // pred_region
      %1484 = vsyncadd [#allocation4], 0
      %s1486 = sshll.u32 [#allocation13], 4
      %s1487 = int_to_ptr.vmem [resolvable:$true] %s1486
      %s1488 = sshll.u32 %s9, 4
      %s1489 = int_to_ptr.hbm [resolvable:$true] %s1488
      %1491 = dma.vmem_to_hbm [thread:$0]  %s1487, 128, %s1489, [#allocation4]
    $region65: #{tpu_custom_call.1} parent=1 // pred_fallthru
      _
    // Predicated region
    $region66: #{tpu_custom_call.1} parent=1 // pred_check
      _
    $region67: #{tpu_custom_call.1} parent=1 // pred_check_branch
      %1493 = sbr.rel (0) target = $region69
    $region68: #{tpu_custom_call.1} parent=1 // pred_region
      %1495 = dma.done [#allocation4], 128
    $region69: #{tpu_custom_call.1} parent=1 // pred_fallthru
      _
    %1496 = vsyncpa [#allocation3], 1
    %1497 = vsyncpa [#allocation6], 1
    %1498 = vsyncpa [#allocation9], 1
    %1499 = vsyncpa [#allocation12], 1
    %1500 = vsyncpa [#allocation4], 1

</llo_original>
